<compile_context>
chip_gen: v7x
topology: tpu7x:2x2x1
jax: 0.10.0
libtpu: 0.0.40
codegen_flags: <defaults>
</compile_context>

<pallas_src>
import jax
import jax.numpy as jnp
from jax import lax
from jax.experimental import pallas as pl
from jax.experimental.pallas import tpu as pltpu

EPS = 1e-5


def _strip_rows(h):
    """Row-strip height used inside the kernel (always divides h)."""
    return 8 if h % 8 == 0 else h


def _conv3x3_strips(src_img, w_flat, y_ref, slab_ref):
    """3x3 'same' (pad=1) convolution of one image via per-strip im2col matmuls.

    src_img : (H, W, C) array in the MXU compute dtype.
    w_flat  : (9*C, Co) array in the MXU compute dtype; row index = (3*dy + dx)*C + c.
    y_ref   : (1, H, W, Co) output ref; written with the f32-accumulated conv values.
    slab_ref: (TH, W, 9*C) VMEM scratch holding the im2col slab of one row strip.

    Returns per-channel (sum, sum_of_squares) of the conv output, each (1, Co) f32
    (single-pass BatchNorm statistics).
    """
    H, W, C = src_img.shape
    TH = slab_ref.shape[0]
    Co = w_flat.shape[1]
    nstrips = H // TH

    s = jnp.zeros((1, Co), jnp.float32)
    ssq = jnp.zeros((1, Co), jnp.float32)
    for j in range(nstrips):                        # static strip loop (small live set)
        r0 = j * TH
        # Zero only the small per-strip slab; its untouched border rows/cols ARE the
        # conv's zero padding (no full-image padded scratch, no misaligned writes).
        slab_ref[...] = jnp.zeros(slab_ref.shape, slab_ref.dtype)
        for dy in range(3):
            ilo = 1 if (j == 0 and dy == 0) else 0
            ihi = TH - 1 if (j == nstrips - 1 and dy == 2) else TH
            for dx in range(3):
                jlo = 1 if dx == 0 else 0
                jhi = W - 1 if dx == 2 else W
                if ihi <= ilo or jhi <= jlo:
                    continue
                k = 3 * dy + dx
                slab_ref[ilo:ihi, jlo:jhi, k * C:(k + 1) * C] = src_img[
                    r0 + ilo + dy - 1:r0 + ihi + dy - 1,
                    jlo + dx - 1:jhi + dx - 1, :]
        # One MXU matmul per strip: (TH*W, 9*C) @ (9*C, Co), f32 accumulation.
        y = jnp.dot(slab_ref[...].reshape(TH * W, 9 * C), w_flat,
                    preferred_element_type=jnp.float32)
        y_ref[0, r0:r0 + TH] = y.reshape(TH, W, Co)
        # Single-pass BN statistics while y is still live (no extra sweeps).
        s = s + jnp.sum(y, axis=0, keepdims=True)
        ssq = ssq + jnp.sum(y * y, axis=0, keepdims=True)
    return s, ssq


def _conv1_stats_kernel(x_ref, w_ref, y_ref, st_ref, slab_ref):
    s, ssq = _conv3x3_strips(x_ref[0], w_ref[...], y_ref, slab_ref)
    st_ref[0, 0:1, :] = s
    st_ref[0, 1:2, :] = ssq


def _bn_relu_conv2_stats_kernel(y1_ref, sc_ref, sh_ref, w_ref, y2_ref, st_ref, slab_ref):
    # BN1 apply + ReLU in f32 on the VPU; conv2's MXU inputs in the compute dtype.
    h1 = jnp.maximum(y1_ref[0] * sc_ref[...] + sh_ref[...], 0.0)
    s, ssq = _conv3x3_strips(h1.astype(w_ref.dtype), w_ref[...], y2_ref, slab_ref)
    st_ref[0, 0:1, :] = s
    st_ref[0, 1:2, :] = ssq


def _bn_relu_kernel(y2_ref, sc_ref, sh_ref, out_ref):
    out_ref[0] = jnp.maximum(y2_ref[0] * sc_ref[...] + sh_ref[...], 0.0
                             ).astype(out_ref.dtype)


def _bn_scale_shift(stats, gamma, beta, count):
    """Fold batch statistics into an affine transform: y -> y*scale + shift."""
    total = jnp.sum(stats[:, 0, :], axis=0)
    total_sq = jnp.sum(stats[:, 1, :], axis=0)
    mean = total / count
    var = jnp.maximum(total_sq / count - mean * mean, 0.0)   # biased batch variance
    scale = gamma * lax.rsqrt(var + EPS)
    shift = beta - mean * scale
    c = scale.shape[0]
    return (scale.reshape(1, 1, c).astype(jnp.float32),
            shift.reshape(1, 1, c).astype(jnp.float32))


def _img_spec(h, w, c):
    return pl.BlockSpec((1, h, w, c), lambda n: (n, 0, 0, 0))


def _full_spec(shape):
    return pl.BlockSpec(shape, lambda n: (0,) * len(shape))


def double_conv(x_nchw, w1_oihw, g1, b1, w2_oihw, g2, b2,
                *, compute_dtype=jnp.bfloat16):
    """DoubleConv forward pass. NCHW in -> NCHW out (PyTorch convention).

    `compute_dtype` is the precision of the MXU inputs (activations / weights);
    accumulation, BatchNorm statistics and all BN/ReLU elementwise math stay f32.
    """
    N, Cin, H, W = x_nchw.shape
    Cmid = w1_oihw.shape[0]
    Cout = w2_oihw.shape[0]
    TH = _strip_rows(H)
    count = N * H * W
    itm = jnp.dtype(compute_dtype).itemsize

    # Layout glue: NHWC (channels on the lane axis); the 3x3 taps are folded into the
    # MXU contraction dim so each conv is a single matmul with K = 9*C.
    x = jnp.transpose(x_nchw, (0, 2, 3, 1)).astype(compute_dtype)
    w1 = jnp.transpose(w1_oihw, (2, 3, 1, 0)).reshape(9 * Cin, Cmid).astype(compute_dtype)
    w2 = jnp.transpose(w2_oihw, (2, 3, 1, 0)).reshape(9 * Cmid, Cout).astype(compute_dtype)

    cparams = pltpu.CompilerParams(
        dimension_semantics=("parallel",),          # images are independent (megacore)
        vmem_limit_bytes=48 * 1024 * 1024)          # stay inside v7x's 64 MiB VMEM

    # ---------- pass 1: conv1 + per-image BN1 partial statistics ----------------
    y1, st1 = pl.pallas_call(
        _conv1_stats_kernel,
        grid=(N,),
        in_specs=[_img_spec(H, W, Cin), _full_spec((9 * Cin, Cmid))],
        out_specs=(_img_spec(H, W, Cmid),
                   pl.BlockSpec((1, 2, Cmid), lambda n: (n, 0, 0))),
        out_shape=(jax.ShapeDtypeStruct((N, H, W, Cmid), jnp.float32),
                   jax.ShapeDtypeStruct((N, 2, Cmid), jnp.float32)),
        scratch_shapes=[pltpu.VMEM((TH, W, 9 * Cin), compute_dtype)],
        compiler_params=cparams,
        cost_estimate=pl.CostEstimate(
            flops=2 * count * 9 * Cin * Cmid, transcendentals=0,
            bytes_accessed=int(count * Cin * itm + 9 * Cin * Cmid * itm
                               + count * Cmid * 4 + N * 2 * Cmid * 4)),
    )(x, w1)

    sc1, sh1 = _bn_scale_shift(st1, g1, b1, count)   # tiny O(C) reduce in the wrapper

    # ---------- pass 2: BN1 apply + ReLU + conv2 + BN2 partial statistics -------
    y2, st2 = pl.pallas_call(
        _bn_relu_conv2_stats_kernel,
        grid=(N,),
        in_specs=[_img_spec(H, W, Cmid), _full_spec((1, 1, Cmid)),
                  _full_spec((1, 1, Cmid)), _full_spec((9 * Cmid, Cout))],
        out_specs=(_img_spec(H, W, Cout),
                   pl.BlockSpec((1, 2, Cout), lambda n: (n, 0, 0))),
        out_shape=(jax.ShapeDtypeStruct((N, H, W, Cout), jnp.float32),
                   jax.ShapeDtypeStruct((N, 2, Cout), jnp.float32)),
        scratch_shapes=[pltpu.VMEM((TH, W, 9 * Cmid), compute_dtype)],
        compiler_params=cparams,
        cost_estimate=pl.CostEstimate(
            flops=2 * count * 9 * Cmid * Cout, transcendentals=0,
            bytes_accessed=int(count * Cmid * 4 + 9 * Cmid * Cout * itm
                               + count * Cout * 4 + N * 2 * Cout * 4)),
    )(y1, sc1, sh1, w2)

    sc2, sh2 = _bn_scale_shift(st2, g2, b2, count)

    # ---------- pass 3: BN2 apply + ReLU ----------------------------------------
    # TODO(synk): for tiny Cout, fold (W, Cout) into the output's last dim so the final
    # stores are lane-dense (unmasked vst); realistic UNet channel counts don't need it.
    out_nhwc = pl.pallas_call(
        _bn_relu_kernel,
        grid=(N,),
        in_specs=[_img_spec(H, W, Cout), _full_spec((1, 1, Cout)),
                  _full_spec((1, 1, Cout))],
        out_specs=_img_spec(H, W, Cout),
        out_shape=jax.ShapeDtypeStruct((N, H, W, Cout), x_nchw.dtype),
        compiler_params=cparams,
        cost_estimate=pl.CostEstimate(
            flops=3 * count * Cout, transcendentals=0,
            bytes_accessed=int(2 * count * Cout * 4)),
    )(y2, sc2, sh2)

    return jnp.transpose(out_nhwc, (0, 3, 1, 2))


# -------------------------------- pure-JAX reference --------------------------------
def ref_double_conv(x, w1, g1, b1, w2, g2, b2, conv_dtype=jnp.float32):
    """Reference DoubleConv. `conv_dtype` sets the precision of the conv inputs so the
    bf16-MXU kernel can be checked against a reference with matching input precision."""
    def conv(y, w):
        return lax.conv_general_dilated(
            y.astype(conv_dtype), w.astype(conv_dtype),
            window_strides=(1, 1), padding=((1, 1), (1, 1)),
            dimension_numbers=("NCHW", "OIHW", "NCHW"),
            preferred_element_type=jnp.float32)

    def bn_relu(y, g, b):
        mean = y.mean(axis=(0, 2, 3), keepdims=True)
        var = ((y - mean) ** 2).mean(axis=(0, 2, 3), keepdims=True)
        yn = (y - mean) * lax.rsqrt(var + EPS)
        return jnp.maximum(yn * g.reshape(1, -1, 1, 1) + b.reshape(1, -1, 1, 1), 0.0)

    y = bn_relu(conv(x, w1), g1, b1)
    return bn_relu(conv(y, w2), g2, b2)


if __name__ == "__main__":
    key = jax.random.PRNGKey(0)
    k_x, k_w1, k_w2, k_g1, k_b1, k_g2, k_b2 = jax.random.split(key, 7)

    N, Cin, Cout, H, W = 2, 4, 8, 16, 16

    x = jax.random.normal(k_x, (N, Cin, H, W), jnp.float32)
    # deterministic synthetic parameters (PyTorch shapes: OIHW / (C,))
    w1 = jax.random.normal(k_w1, (Cout, Cin, 3, 3), jnp.float32) * 0.2
    w2 = jax.random.normal(k_w2, (Cout, Cout, 3, 3), jnp.float32) * 0.2
    g1 = 1.0 + 0.1 * jax.random.normal(k_g1, (Cout,), jnp.float32)
    b1 = 0.1 * jax.random.normal(k_b1, (Cout,), jnp.float32)
    g2 = 1.0 + 0.1 * jax.random.normal(k_g2, (Cout,), jnp.float32)
    b2 = 0.1 * jax.random.normal(k_b2, (Cout,), jnp.float32)

    # 1) exact-semantics check: f32 MXU inputs vs. the f32 reference (tight tolerance).
    out_f32 = jax.block_until_ready(
        double_conv(x, w1, g1, b1, w2, g2, b2, compute_dtype=jnp.float32))
    ref_f32 = jax.block_until_ready(ref_double_conv(x, w1, g1, b1, w2, g2, b2))
    assert out_f32.shape == (N, Cout, H, W), out_f32.shape
    err_f32 = float(jnp.max(jnp.abs(out_f32 - ref_f32)))
    assert err_f32 < 1e-3, f"f32 max abs error too large: {err_f32}"

    # 2) performance default: bf16 MXU inputs (f32 accumulation / BN), checked against
    #    a reference using the same MXU-input precision (tolerance covers occasional
    #    bf16 rounding-boundary flips of the intermediate activation).
    out_bf16 = jax.block_until_ready(double_conv(x, w1, g1, b1, w2, g2, b2))
    ref_bf16 = jax.block_until_ready(
        ref_double_conv(x, w1, g1, b1, w2, g2, b2, conv_dtype=jnp.bfloat16))
    diff = jnp.abs(out_bf16 - ref_bf16)
    err_max = float(jnp.max(diff))
    err_mean = float(jnp.mean(diff))
    assert err_max < 3e-2, f"bf16 max abs error too large: {err_max}"
    assert err_mean < 2e-3, f"bf16 mean abs error too large: {err_mean}"

    print("KERNEL_OK")
</pallas_src>

<mosaic_0001>
module attributes {stable_mosaic.version = 11 : i64} {
  func.func @_conv1_stats_kernel(%arg0: i32, %arg1: memref<1x16x16x4xf32, #tpu.memory_space<vmem>>, %arg2: memref<36x8xf32, #tpu.memory_space<vmem>>, %arg3: memref<1x16x16x8xf32, #tpu.memory_space<vmem>>, %arg4: memref<1x2x8xf32, #tpu.memory_space<vmem>>, %arg5: memref<8x16x36xf32, #tpu.memory_space<vmem>>) attributes {dimension_semantics = [#tpu.dimension_semantics<parallel>], iteration_bounds = array<i64: 2>, scalar_prefetch = 0 : i64, scratch_operands = 1 : i64, tpu.core_type = #tpu.core_type<tc>, window_params = [{transform_indices = @transform_0, window_bounds = array<i64: 1, 16, 16, 4>}, {pipeline_mode = #tpu.pipeline_mode<synchronous>, transform_indices = @transform_1, window_bounds = array<i64: 36, 8>}, {transform_indices = @transform_2, window_bounds = array<i64: 1, 16, 16, 8>}, {transform_indices = @transform_3, window_bounds = array<i64: 1, 2, 8>}]} {
    %c0 = arith.constant 0 : index
    %c0_0 = arith.constant 0 : index
    %c0_1 = arith.constant 0 : index
    %c0_2 = arith.constant 0 : index
    %0 = vector.load %arg1[%c0, %c0_0, %c0_1, %c0_2] : memref<1x16x16x4xf32, #tpu.memory_space<vmem>>, vector<1x16x16x4xf32>
    %1 = vector.shape_cast %0 : vector<1x16x16x4xf32> to vector<16x16x4xf32>
    %c0_3 = arith.constant 0 : index
    %c0_4 = arith.constant 0 : index
    %2 = vector.load %arg2[%c0_3, %c0_4] : memref<36x8xf32, #tpu.memory_space<vmem>>, vector<36x8xf32>
    %cst = arith.constant 0.000000e+00 : f32
    %3 = vector.broadcast %cst : f32 to vector<1x8xf32>
    %cst_5 = arith.constant 0.000000e+00 : f32
    %4 = vector.broadcast %cst_5 : f32 to vector<1x8xf32>
    %cst_6 = arith.constant 0.000000e+00 : f32
    %5 = vector.broadcast %cst_6 : f32 to vector<8x16x36xf32>
    %c0_7 = arith.constant 0 : index
    %c0_8 = arith.constant 0 : index
    %c0_9 = arith.constant 0 : index
    %6 = vector.load %arg5[%c0_7, %c0_8, %c0_9] : memref<8x16x36xf32, #tpu.memory_space<vmem>>, vector<8x16x36xf32>
    tpu.vector_store %arg5[%c0_7, %c0_8, %c0_9], %5 {strides = array<i32>} : memref<8x16x36xf32, #tpu.memory_space<vmem>>, vector<8x16x36xf32>,
    %7 = vector.extract_strided_slice %1 {offsets = [0, 0, 0], sizes = [7, 15, 4], strides = [1, 1, 1]} : vector<16x16x4xf32> to vector<7x15x4xf32>
    %c1 = arith.constant 1 : index
    %c1_10 = arith.constant 1 : index
    %c0_11 = arith.constant 0 : index
    %8 = vector.load %arg5[%c1, %c1_10, %c0_11] : memref<8x16x36xf32, #tpu.memory_space<vmem>>, vector<7x15x4xf32>
    tpu.vector_store %arg5[%c1, %c1_10, %c0_11], %7 {strides = array<i32>} : memref<8x16x36xf32, #tpu.memory_space<vmem>>, vector<7x15x4xf32>,
    %9 = vector.extract_strided_slice %1 {offsets = [0, 0, 0], sizes = [7, 16, 4], strides = [1, 1, 1]} : vector<16x16x4xf32> to vector<7x16x4xf32>
    %c1_12 = arith.constant 1 : index
    %c0_13 = arith.constant 0 : index
    %c4 = arith.constant 4 : index
    %10 = vector.load %arg5[%c1_12, %c0_13, %c4] : memref<8x16x36xf32, #tpu.memory_space<vmem>>, vector<7x16x4xf32>
    tpu.vector_store %arg5[%c1_12, %c0_13, %c4], %9 {strides = array<i32>} : memref<8x16x36xf32, #tpu.memory_space<vmem>>, vector<7x16x4xf32>,
    %11 = vector.extract_strided_slice %1 {offsets = [0, 1, 0], sizes = [7, 15, 4], strides = [1, 1, 1]} : vector<16x16x4xf32> to vector<7x15x4xf32>
    %c1_14 = arith.constant 1 : index
    %c0_15 = arith.constant 0 : index
    %c8 = arith.constant 8 : index
    %12 = vector.load %arg5[%c1_14, %c0_15, %c8] : memref<8x16x36xf32, #tpu.memory_space<vmem>>, vector<7x15x4xf32>
    tpu.vector_store %arg5[%c1_14, %c0_15, %c8], %11 {strides = array<i32>} : memref<8x16x36xf32, #tpu.memory_space<vmem>>, vector<7x15x4xf32>,
    %13 = vector.extract_strided_slice %1 {offsets = [0, 0, 0], sizes = [8, 15, 4], strides = [1, 1, 1]} : vector<16x16x4xf32> to vector<8x15x4xf32>
    %c0_16 = arith.constant 0 : index
    %c1_17 = arith.constant 1 : index
    %c12 = arith.constant 12 : index
    %14 = vector.load %arg5[%c0_16, %c1_17, %c12] : memref<8x16x36xf32, #tpu.memory_space<vmem>>, vector<8x15x4xf32>
    tpu.vector_store %arg5[%c0_16, %c1_17, %c12], %13 {strides = array<i32>} : memref<8x16x36xf32, #tpu.memory_space<vmem>>, vector<8x15x4xf32>,
    %15 = vector.extract_strided_slice %1 {offsets = [0, 0, 0], sizes = [8, 16, 4], strides = [1, 1, 1]} : vector<16x16x4xf32> to vector<8x16x4xf32>
    %c0_18 = arith.constant 0 : index
    %c0_19 = arith.constant 0 : index
    %c16 = arith.constant 16 : index
    %16 = vector.load %arg5[%c0_18, %c0_19, %c16] : memref<8x16x36xf32, #tpu.memory_space<vmem>>, vector<8x16x4xf32>
    tpu.vector_store %arg5[%c0_18, %c0_19, %c16], %15 {strides = array<i32>} : memref<8x16x36xf32, #tpu.memory_space<vmem>>, vector<8x16x4xf32>,
    %17 = vector.extract_strided_slice %1 {offsets = [0, 1, 0], sizes = [8, 15, 4], strides = [1, 1, 1]} : vector<16x16x4xf32> to vector<8x15x4xf32>
    %c0_20 = arith.constant 0 : index
    %c0_21 = arith.constant 0 : index
    %c20 = arith.constant 20 : index
    %18 = vector.load %arg5[%c0_20, %c0_21, %c20] : memref<8x16x36xf32, #tpu.memory_space<vmem>>, vector<8x15x4xf32>
    tpu.vector_store %arg5[%c0_20, %c0_21, %c20], %17 {strides = array<i32>} : memref<8x16x36xf32, #tpu.memory_space<vmem>>, vector<8x15x4xf32>,
    %19 = vector.extract_strided_slice %1 {offsets = [1, 0, 0], sizes = [8, 15, 4], strides = [1, 1, 1]} : vector<16x16x4xf32> to vector<8x15x4xf32>
    %c0_22 = arith.constant 0 : index
    %c1_23 = arith.constant 1 : index
    %c24 = arith.constant 24 : index
    %20 = vector.load %arg5[%c0_22, %c1_23, %c24] : memref<8x16x36xf32, #tpu.memory_space<vmem>>, vector<8x15x4xf32>
    tpu.vector_store %arg5[%c0_22, %c1_23, %c24], %19 {strides = array<i32>} : memref<8x16x36xf32, #tpu.memory_space<vmem>>, vector<8x15x4xf32>,
    %21 = vector.extract_strided_slice %1 {offsets = [1, 0, 0], sizes = [8, 16, 4], strides = [1, 1, 1]} : vector<16x16x4xf32> to vector<8x16x4xf32>
    %c0_24 = arith.constant 0 : index
    %c0_25 = arith.constant 0 : index
    %c28 = arith.constant 28 : index
    %22 = vector.load %arg5[%c0_24, %c0_25, %c28] : memref<8x16x36xf32, #tpu.memory_space<vmem>>, vector<8x16x4xf32>
    tpu.vector_store %arg5[%c0_24, %c0_25, %c28], %21 {strides = array<i32>} : memref<8x16x36xf32, #tpu.memory_space<vmem>>, vector<8x16x4xf32>,
    %23 = vector.extract_strided_slice %1 {offsets = [1, 1, 0], sizes = [8, 15, 4], strides = [1, 1, 1]} : vector<16x16x4xf32> to vector<8x15x4xf32>
    %c0_26 = arith.constant 0 : index
    %c0_27 = arith.constant 0 : index
    %c32 = arith.constant 32 : index
    %24 = vector.load %arg5[%c0_26, %c0_27, %c32] : memref<8x16x36xf32, #tpu.memory_space<vmem>>, vector<8x15x4xf32>
    tpu.vector_store %arg5[%c0_26, %c0_27, %c32], %23 {strides = array<i32>} : memref<8x16x36xf32, #tpu.memory_space<vmem>>, vector<8x15x4xf32>,
    %c0_28 = arith.constant 0 : index
    %c0_29 = arith.constant 0 : index
    %c0_30 = arith.constant 0 : index
    %25 = vector.load %arg5[%c0_28, %c0_29, %c0_30] : memref<8x16x36xf32, #tpu.memory_space<vmem>>, vector<8x16x36xf32>
    %26 = vector.shape_cast %25 : vector<8x16x36xf32> to vector<128x36xf32>
    %cst_31 = arith.constant dense<0.000000e+00> : vector<128x8xf32>
    %27 = tpu.matmul %26, %2, %cst_31 {dimension_numbers = #tpu.dot_dimension_numbers<[1], [0], [0], [1], [0, 0, 1, 1], [], []>} : vector<128x36xf32>, vector<36x8xf32>, vector<128x8xf32> -> vector<128x8xf32>
    %28 = vector.shape_cast %27 : vector<128x8xf32> to vector<8x16x8xf32>
    %c0_32 = arith.constant 0 : index
    %c0_33 = arith.constant 0 : index
    %c0_34 = arith.constant 0 : index
    %c0_35 = arith.constant 0 : index
    %29 = vector.load %arg3[%c0_32, %c0_33, %c0_34, %c0_35] : memref<1x16x16x8xf32, #tpu.memory_space<vmem>>, vector<1x8x16x8xf32>
    %30 = vector.shape_cast %29 : vector<1x8x16x8xf32> to vector<8x16x8xf32>
    %31 = vector.shape_cast %28 : vector<8x16x8xf32> to vector<1x8x16x8xf32>
    tpu.vector_store %arg3[%c0_32, %c0_33, %c0_34, %c0_35], %31 {strides = array<i32>} : memref<1x16x16x8xf32, #tpu.memory_space<vmem>>, vector<1x8x16x8xf32>,
    %cst_36 = arith.constant dense<0.000000e+00> : vector<8xf32>
    %32 = vector.multi_reduction <add>, %27, %cst_36 [0] : vector<128x8xf32> to vector<8xf32>
    %33 = vector.shape_cast %32 : vector<8xf32> to vector<1x8xf32>
    %34 = arith.addf %3, %33 : vector<1x8xf32>
    %35 = arith.mulf %27, %27 : vector<128x8xf32>
    %cst_37 = arith.constant dense<0.000000e+00> : vector<8xf32>
    %36 = vector.multi_reduction <add>, %35, %cst_37 [0] : vector<128x8xf32> to vector<8xf32>
    %37 = vector.shape_cast %36 : vector<8xf32> to vector<1x8xf32>
    %38 = arith.addf %4, %37 : vector<1x8xf32>
    %cst_38 = arith.constant 0.000000e+00 : f32
    %39 = vector.broadcast %cst_38 : f32 to vector<8x16x36xf32>
    %c0_39 = arith.constant 0 : index
    %c0_40 = arith.constant 0 : index
    %c0_41 = arith.constant 0 : index
    %40 = vector.load %arg5[%c0_39, %c0_40, %c0_41] : memref<8x16x36xf32, #tpu.memory_space<vmem>>, vector<8x16x36xf32>
    tpu.vector_store %arg5[%c0_39, %c0_40, %c0_41], %39 {strides = array<i32>} : memref<8x16x36xf32, #tpu.memory_space<vmem>>, vector<8x16x36xf32>,
    %41 = vector.extract_strided_slice %1 {offsets = [7, 0, 0], sizes = [8, 15, 4], strides = [1, 1, 1]} : vector<16x16x4xf32> to vector<8x15x4xf32>
    %c0_42 = arith.constant 0 : index
    %c1_43 = arith.constant 1 : index
    %c0_44 = arith.constant 0 : index
    %42 = vector.load %arg5[%c0_42, %c1_43, %c0_44] : memref<8x16x36xf32, #tpu.memory_space<vmem>>, vector<8x15x4xf32>
    tpu.vector_store %arg5[%c0_42, %c1_43, %c0_44], %41 {strides = array<i32>} : memref<8x16x36xf32, #tpu.memory_space<vmem>>, vector<8x15x4xf32>,
    %43 = vector.extract_strided_slice %1 {offsets = [7, 0, 0], sizes = [8, 16, 4], strides = [1, 1, 1]} : vector<16x16x4xf32> to vector<8x16x4xf32>
    %c0_45 = arith.constant 0 : index
    %c0_46 = arith.constant 0 : index
    %c4_47 = arith.constant 4 : index
    %44 = vector.load %arg5[%c0_45, %c0_46, %c4_47] : memref<8x16x36xf32, #tpu.memory_space<vmem>>, vector<8x16x4xf32>
    tpu.vector_store %arg5[%c0_45, %c0_46, %c4_47], %43 {strides = array<i32>} : memref<8x16x36xf32, #tpu.memory_space<vmem>>, vector<8x16x4xf32>,
    %45 = vector.extract_strided_slice %1 {offsets = [7, 1, 0], sizes = [8, 15, 4], strides = [1, 1, 1]} : vector<16x16x4xf32> to vector<8x15x4xf32>
    %c0_48 = arith.constant 0 : index
    %c0_49 = arith.constant 0 : index
    %c8_50 = arith.constant 8 : index
    %46 = vector.load %arg5[%c0_48, %c0_49, %c8_50] : memref<8x16x36xf32, #tpu.memory_space<vmem>>, vector<8x15x4xf32>
    tpu.vector_store %arg5[%c0_48, %c0_49, %c8_50], %45 {strides = array<i32>} : memref<8x16x36xf32, #tpu.memory_space<vmem>>, vector<8x15x4xf32>,
    %47 = vector.extract_strided_slice %1 {offsets = [8, 0, 0], sizes = [8, 15, 4], strides = [1, 1, 1]} : vector<16x16x4xf32> to vector<8x15x4xf32>
    %c0_51 = arith.constant 0 : index
    %c1_52 = arith.constant 1 : index
    %c12_53 = arith.constant 12 : index
    %48 = vector.load %arg5[%c0_51, %c1_52, %c12_53] : memref<8x16x36xf32, #tpu.memory_space<vmem>>, vector<8x15x4xf32>
    tpu.vector_store %arg5[%c0_51, %c1_52, %c12_53], %47 {strides = array<i32>} : memref<8x16x36xf32, #tpu.memory_space<vmem>>, vector<8x15x4xf32>,
    %49 = vector.extract_strided_slice %1 {offsets = [8, 0, 0], sizes = [8, 16, 4], strides = [1, 1, 1]} : vector<16x16x4xf32> to vector<8x16x4xf32>
    %c0_54 = arith.constant 0 : index
    %c0_55 = arith.constant 0 : index
    %c16_56 = arith.constant 16 : index
    %50 = vector.load %arg5[%c0_54, %c0_55, %c16_56] : memref<8x16x36xf32, #tpu.memory_space<vmem>>, vector<8x16x4xf32>
    tpu.vector_store %arg5[%c0_54, %c0_55, %c16_56], %49 {strides = array<i32>} : memref<8x16x36xf32, #tpu.memory_space<vmem>>, vector<8x16x4xf32>,
    %51 = vector.extract_strided_slice %1 {offsets = [8, 1, 0], sizes = [8, 15, 4], strides = [1, 1, 1]} : vector<16x16x4xf32> to vector<8x15x4xf32>
    %c0_57 = arith.constant 0 : index
    %c0_58 = arith.constant 0 : index
    %c20_59 = arith.constant 20 : index
    %52 = vector.load %arg5[%c0_57, %c0_58, %c20_59] : memref<8x16x36xf32, #tpu.memory_space<vmem>>, vector<8x15x4xf32>
    tpu.vector_store %arg5[%c0_57, %c0_58, %c20_59], %51 {strides = array<i32>} : memref<8x16x36xf32, #tpu.memory_space<vmem>>, vector<8x15x4xf32>,
    %53 = vector.extract_strided_slice %1 {offsets = [9, 0, 0], sizes = [7, 15, 4], strides = [1, 1, 1]} : vector<16x16x4xf32> to vector<7x15x4xf32>
    %c0_60 = arith.constant 0 : index
    %c1_61 = arith.constant 1 : index
    %c24_62 = arith.constant 24 : index
    %54 = vector.load %arg5[%c0_60, %c1_61, %c24_62] : memref<8x16x36xf32, #tpu.memory_space<vmem>>, vector<7x15x4xf32>
    tpu.vector_store %arg5[%c0_60, %c1_61, %c24_62], %53 {strides = array<i32>} : memref<8x16x36xf32, #tpu.memory_space<vmem>>, vector<7x15x4xf32>,
    %55 = vector.extract_strided_slice %1 {offsets = [9, 0, 0], sizes = [7, 16, 4], strides = [1, 1, 1]} : vector<16x16x4xf32> to vector<7x16x4xf32>
    %c0_63 = arith.constant 0 : index
    %c0_64 = arith.constant 0 : index
    %c28_65 = arith.constant 28 : index
    %56 = vector.load %arg5[%c0_63, %c0_64, %c28_65] : memref<8x16x36xf32, #tpu.memory_space<vmem>>, vector<7x16x4xf32>
    tpu.vector_store %arg5[%c0_63, %c0_64, %c28_65], %55 {strides = array<i32>} : memref<8x16x36xf32, #tpu.memory_space<vmem>>, vector<7x16x4xf32>,
    %57 = vector.extract_strided_slice %1 {offsets = [9, 1, 0], sizes = [7, 15, 4], strides = [1, 1, 1]} : vector<16x16x4xf32> to vector<7x15x4xf32>
    %c0_66 = arith.constant 0 : index
    %c0_67 = arith.constant 0 : index
    %c32_68 = arith.constant 32 : index
    %58 = vector.load %arg5[%c0_66, %c0_67, %c32_68] : memref<8x16x36xf32, #tpu.memory_space<vmem>>, vector<7x15x4xf32>
    tpu.vector_store %arg5[%c0_66, %c0_67, %c32_68], %57 {strides = array<i32>} : memref<8x16x36xf32, #tpu.memory_space<vmem>>, vector<7x15x4xf32>,
    %c0_69 = arith.constant 0 : index
    %c0_70 = arith.constant 0 : index
    %c0_71 = arith.constant 0 : index
    %59 = vector.load %arg5[%c0_69, %c0_70, %c0_71] : memref<8x16x36xf32, #tpu.memory_space<vmem>>, vector<8x16x36xf32>
    %60 = vector.shape_cast %59 : vector<8x16x36xf32> to vector<128x36xf32>
    %cst_72 = arith.constant dense<0.000000e+00> : vector<128x8xf32>
    %61 = tpu.matmul %60, %2, %cst_72 {dimension_numbers = #tpu.dot_dimension_numbers<[1], [0], [0], [1], [0, 0, 1, 1], [], []>} : vector<128x36xf32>, vector<36x8xf32>, vector<128x8xf32> -> vector<128x8xf32>
    %62 = vector.shape_cast %61 : vector<128x8xf32> to vector<8x16x8xf32>
    %c0_73 = arith.constant 0 : index
    %c8_74 = arith.constant 8 : index
    %c0_75 = arith.constant 0 : index
    %c0_76 = arith.constant 0 : index
    %63 = vector.load %arg3[%c0_73, %c8_74, %c0_75, %c0_76] : memref<1x16x16x8xf32, #tpu.memory_space<vmem>>, vector<1x8x16x8xf32>
    %64 = vector.shape_cast %63 : vector<1x8x16x8xf32> to vector<8x16x8xf32>
    %65 = vector.shape_cast %62 : vector<8x16x8xf32> to vector<1x8x16x8xf32>
    tpu.vector_store %arg3[%c0_73, %c8_74, %c0_75, %c0_76], %65 {strides = array<i32>} : memref<1x16x16x8xf32, #tpu.memory_space<vmem>>, vector<1x8x16x8xf32>,
    %cst_77 = arith.constant dense<0.000000e+00> : vector<8xf32>
    %66 = vector.multi_reduction <add>, %61, %cst_77 [0] : vector<128x8xf32> to vector<8xf32>
    %67 = vector.shape_cast %66 : vector<8xf32> to vector<1x8xf32>
    %68 = arith.addf %34, %67 : vector<1x8xf32>
    %69 = arith.mulf %61, %61 : vector<128x8xf32>
    %cst_78 = arith.constant dense<0.000000e+00> : vector<8xf32>
    %70 = vector.multi_reduction <add>, %69, %cst_78 [0] : vector<128x8xf32> to vector<8xf32>
    %71 = vector.shape_cast %70 : vector<8xf32> to vector<1x8xf32>
    %72 = arith.addf %38, %71 : vector<1x8xf32>
    %c0_79 = arith.constant 0 : index
    %c0_80 = arith.constant 0 : index
    %c0_81 = arith.constant 0 : index
    %73 = vector.load %arg4[%c0_79, %c0_80, %c0_81] : memref<1x2x8xf32, #tpu.memory_space<vmem>>, vector<1x1x8xf32>
    %74 = vector.shape_cast %73 : vector<1x1x8xf32> to vector<1x8xf32>
    %75 = vector.shape_cast %68 : vector<1x8xf32> to vector<1x1x8xf32>
    tpu.vector_store %arg4[%c0_79, %c0_80, %c0_81], %75 {strides = array<i32>} : memref<1x2x8xf32, #tpu.memory_space<vmem>>, vector<1x1x8xf32>,
    %c0_82 = arith.constant 0 : index
    %c1_83 = arith.constant 1 : index
    %c0_84 = arith.constant 0 : index
    %76 = vector.load %arg4[%c0_82, %c1_83, %c0_84] : memref<1x2x8xf32, #tpu.memory_space<vmem>>, vector<1x1x8xf32>
    %77 = vector.shape_cast %76 : vector<1x1x8xf32> to vector<1x8xf32>
    %78 = vector.shape_cast %72 : vector<1x8xf32> to vector<1x1x8xf32>
    tpu.vector_store %arg4[%c0_82, %c1_83, %c0_84], %78 {strides = array<i32>} : memref<1x2x8xf32, #tpu.memory_space<vmem>>, vector<1x1x8xf32>,
    return
  }
  func.func @transform_0(%arg0: i32) -> (i32, i32, i32, i32) {
    %c0_i32 = arith.constant 0 : i32
    %c0_i32_0 = arith.constant 0 : i32
    %c0_i32_1 = arith.constant 0 : i32
    %c0_i32_2 = arith.constant 0 : i32
    return %arg0, %c0_i32, %c0_i32_0, %c0_i32_1 : i32, i32, i32, i32
  }
  func.func @transform_1(%arg0: i32) -> (i32, i32) {
    %c0_i32 = arith.constant 0 : i32
    %c0_i32_0 = arith.constant 0 : i32
    %c0_i32_1 = arith.constant 0 : i32
    return %c0_i32, %c0_i32_0 : i32, i32
  }
  func.func @transform_2(%arg0: i32) -> (i32, i32, i32, i32) {
    %c0_i32 = arith.constant 0 : i32
    %c0_i32_0 = arith.constant 0 : i32
    %c0_i32_1 = arith.constant 0 : i32
    %c0_i32_2 = arith.constant 0 : i32
    return %arg0, %c0_i32, %c0_i32_0, %c0_i32_1 : i32, i32, i32, i32
  }
  func.func @transform_3(%arg0: i32) -> (i32, i32, i32) {
    %c0_i32 = arith.constant 0 : i32
    %c0_i32_0 = arith.constant 0 : i32
    %c0_i32_1 = arith.constant 0 : i32
    return %arg0, %c0_i32, %c0_i32_0 : i32, i32, i32
  }
}

</mosaic_0001>

<llo_original>
// kernel: tpu_custom_call.1
$region0: #{tpu_custom_call.1}
  #allocation0 [shape = 'u32[]', space=smem, size = 0x4, offset = 0x4, fixed_abs, tag = 'smem constant byte address 0x4 - core index']
  #allocation1 [shape = 'u32[144,128]{1,0:T(1,128)}', space=vmem, size = 0x12000, scoped, tag = 'internal scratch']
  #allocation2 [shape = 'f32[8,16,36]{2,1,0:T(8,128)}', space=vmem, size = 0x10000, scoped, tag = 'scratch operand']
  %s0 = inlined_call_operand.vmem [shape: f32[2,16,16,4], index: 0, kind: input, shape index: {}]
  %s1 = inlined_call_operand.vmem [shape: f32[36,8], index: 1, kind: input, shape index: {}]
  %s2 = inlined_call_operand.vmem [shape: f32[2,16,16,8], index: 2, kind: output, shape index: {0}]
  %s3 = inlined_call_operand.hbm [shape: f32[2,2,8], index: 3, kind: output, shape index: {1}]
  %4 = xla_tuple %s2, %s3
  %s5 = sld [smem:[#allocation0]]
  $region49: #{tpu_custom_call.1} parent=0
    _
  %s7 = ssub.s32 1, %s5
  %s8 = scalar_select 0, %s7, %s5
  $region1: #{tpu_custom_call.1} parent=0
    #allocation3 [shape = 'u8[2048]{0}', space=vmem, size = 0x800, scoped, tag = 'output window, operand 1']
    #allocation4 [shape = 's32[2]{0}', space=sflag, size = 0x8, scoped, tag = 'scoped memory for tpu_custom_call.1']
    %9 = vsyncpa [#allocation4], 0
    %s10 = scalar_lea.sflag [#allocation4], 1
    %11 = vsyncpa %s10, 0
    loop: start=0, step=1, limit=4
    $region2: #{tpu_custom_call.1} parent=1 // loop_pre_header
      _
    $region3: #{tpu_custom_call.1} parent=1 // loop_header
      %s13 = sphi 0, %s17
      %p14 = scmp.ge.s32.totalorder %s13, 4
      %s23 = sphi 0, %s25
      %s26 = sphi 0, %s23
      %s27 = sphi 0, %s26
      %s43 = sphi 0, %s27
      %s47 = sphi 0, %s47
      %s49 = sphi 0, %s47
      %s50 = sphi 0, %s49
      %s64 = sphi 0, %s50
      %s70 = sphi 0, %s72
      %s73 = sphi 0, %s70
      %s74 = sphi 0, %s73
      %s90 = sphi 0, %s74
      %s96 = sphi 0, %s98
      %s99 = sphi 0, %s96
      %s100 = sphi 0, %s99
      %s116 = sphi 0, %s100
    $region4: #{tpu_custom_call.1} parent=1 // loop_header_branch
      %16 = sbr.rel (%p14) target = $region8
    $region5: #{tpu_custom_call.1} parent=1 // loop_body
      %s18 = ssub.s32 %s13, 1
      %s19 = ssub.s32 %s13, 2
      %s20 = sadd.s32 %s13, 1
      %s21 = ssub.s32 %s13, %s20
      %p22 = scmp.eq.s32.totalorder %s21, 0
      %s24 = sadd.s32 %s23, 1
      %s25 = scalar_select %p22, %s23, %s24
      %p28 = pneg %p22
      %p29 = scmp.eq.s32.totalorder %s13, 1
      %p30 = por %p28, %p29
      %p31 = scmp.ne.s32.totalorder %s23, %s26
      %p32 = scmp.eq.s32.totalorder %s13, 0
      %p33 = por %p31, %p32
      %p34 = scmp.ne.s32.totalorder %s23, %s26
      %p35 = scmp.eq.s32.totalorder %s18, 1
      %p36 = por %p34, %p35
      %p37 = scmp.ne.s32.totalorder %s26, %s27
      %p38 = scmp.eq.s32.totalorder %s18, 0
      %p39 = por %p37, %p38
      %p40 = scmp.ne.s32.totalorder %s26, %s27
      %p41 = scmp.eq.s32.totalorder %s19, 1
      %p42 = por %p40, %p41
      %p44 = scmp.ne.s32.totalorder %s27, %s43
      %p45 = scmp.eq.s32.totalorder %s19, 0
      %p46 = por %p44, %p45
      %s48 = sadd.s32 %s47, 1
      %p51 = scmp.eq.s32.totalorder %s13, 1
      %p52 = scmp.ne.s32.totalorder %s47, %s49
      %p53 = scmp.eq.s32.totalorder %s13, 0
      %p54 = por %p52, %p53
      %p55 = scmp.ne.s32.totalorder %s47, %s49
      %p56 = scmp.eq.s32.totalorder %s18, 1
      %p57 = por %p55, %p56
      %p58 = scmp.ne.s32.totalorder %s49, %s50
      %p59 = scmp.eq.s32.totalorder %s18, 0
      %p60 = por %p58, %p59
      %p61 = scmp.ne.s32.totalorder %s49, %s50
      %p62 = scmp.eq.s32.totalorder %s19, 1
      %p63 = por %p61, %p62
      %p65 = scmp.ne.s32.totalorder %s50, %s64
      %p66 = scmp.eq.s32.totalorder %s19, 0
      %p67 = por %p65, %p66
      %s68 = ssub.s32 %s13, %s20
      %p69 = scmp.eq.s32.totalorder %s68, 0
      %s71 = sadd.s32 %s70, 1
      %s72 = scalar_select %p69, %s70, %s71
      %p75 = pneg %p69
      %p76 = scmp.eq.s32.totalorder %s13, 1
      %p77 = por %p75, %p76
      %p78 = scmp.ne.s32.totalorder %s70, %s73
      %p79 = scmp.eq.s32.totalorder %s13, 0
      %p80 = por %p78, %p79
      %p81 = scmp.ne.s32.totalorder %s70, %s73
      %p82 = scmp.eq.s32.totalorder %s18, 1
      %p83 = por %p81, %p82
      %p84 = scmp.ne.s32.totalorder %s73, %s74
      %p85 = scmp.eq.s32.totalorder %s18, 0
      %p86 = por %p84, %p85
      %p87 = scmp.ne.s32.totalorder %s73, %s74
      %p88 = scmp.eq.s32.totalorder %s19, 1
      %p89 = por %p87, %p88
      %p91 = scmp.ne.s32.totalorder %s74, %s90
      %p92 = scmp.eq.s32.totalorder %s19, 0
      %p93 = por %p91, %p92
      %s94 = ssub.s32 %s13, %s20
      %p95 = scmp.eq.s32.totalorder %s94, 0
      %s97 = sadd.s32 %s96, 1
      %s98 = scalar_select %p95, %s96, %s97
      %p101 = pneg %p95
      %p102 = scmp.eq.s32.totalorder %s13, 1
      %p103 = por %p101, %p102
      %p104 = scmp.ne.s32.totalorder %s96, %s99
      %p105 = scmp.eq.s32.totalorder %s13, 0
      %p106 = por %p104, %p105
      %p107 = scmp.ne.s32.totalorder %s96, %s99
      %p108 = scmp.eq.s32.totalorder %s18, 1
      %p109 = por %p107, %p108
      %p110 = scmp.ne.s32.totalorder %s99, %s100
      %p111 = scmp.eq.s32.totalorder %s18, 0
      %p112 = por %p110, %p111
      %p113 = scmp.ne.s32.totalorder %s99, %s100
      %p114 = scmp.eq.s32.totalorder %s19, 1
      %p115 = por %p113, %p114
      %p117 = scmp.ne.s32.totalorder %s100, %s116
      %p118 = scmp.eq.s32.totalorder %s19, 0
      %p119 = por %p117, %p118
      %p120 = scmp.le.s32.totalorder 1, %s13
      %p121 = scmp.lt.s32.totalorder %s13, 3
      %p122 = pnand %p120, %p121
      %p123 = pneg %p122
      // Predicated region
      $region9: #{tpu_custom_call.1} parent=5 // pred_check
        _
      $region10: #{tpu_custom_call.1} parent=5 // pred_check_branch
        %125 = sbr.rel (%p122) target = $region12
      $region11: #{tpu_custom_call.1} parent=5 // pred_region
        %s126 = ssub.s32 %s13, 1
        // Predicated region
        $region13: #{tpu_custom_call.1} parent=11 // pred_check
          %p127 = pneg %p60
        $region14: #{tpu_custom_call.1} parent=11 // pred_check_branch
          %129 = sbr.rel (%p127) target = $region16
        $region15: #{tpu_custom_call.1} parent=11 // pred_region
          _
        $region16: #{tpu_custom_call.1} parent=11 // pred_fallthru
          _
      $region12: #{tpu_custom_call.1} parent=5 // pred_fallthru
        _
      %p130 = scmp.lt.s32.totalorder %s13, 2
      // Predicated region
      $region17: #{tpu_custom_call.1} parent=5 // pred_check
        %p131 = pneg %p130
      $region18: #{tpu_custom_call.1} parent=5 // pred_check_branch
        %133 = sbr.rel (%p131) target = $region20
      $region19: #{tpu_custom_call.1} parent=5 // pred_region
        // Predicated region
        $region21: #{tpu_custom_call.1} parent=19 // pred_check
          %p134 = pneg %p33
        $region22: #{tpu_custom_call.1} parent=19 // pred_check_branch
          %136 = sbr.rel (%p134) target = $region24
        $region23: #{tpu_custom_call.1} parent=19 // pred_region
          %p137 = scmp.lt.s32.totalorder %s13, 1
          %s138 = scalar_select %p137, %s13, 1
          %s139 = smul.addr %s138, 32
          %s140 = smul.addr %s139, 8
          %s141 = scalar_lea.vmem %s0, %s140
        $region24: #{tpu_custom_call.1} parent=19 // pred_fallthru
          _
      $region20: #{tpu_custom_call.1} parent=5 // pred_fallthru
        _
      %p142 = scmp.le.s32.totalorder 1, %s13
      %p143 = scmp.lt.s32.totalorder %s13, 3
      %p144 = pnand %p142, %p143
      %p145 = pneg %p144
      // Predicated region
      $region25: #{tpu_custom_call.1} parent=5 // pred_check
        _
      $region26: #{tpu_custom_call.1} parent=5 // pred_check_branch
        %147 = sbr.rel (%p144) target = $region28
      $region27: #{tpu_custom_call.1} parent=5 // pred_region
        %s148 = ssub.s32 %s13, 1
        %p149 = scmp.lt.s32.totalorder %s18, 1
        %s150 = scalar_select %p149, %s18, 1
        %s151 = smul.addr %s150, 32
        %s152 = smul.addr %s151, 8
        %s153 = scalar_lea.vmem %s0, %s152
        %p154 = pneg %p39
        %p155 = pneg %p36
        %p156 = pneg %p60
        %p157 = pneg %p57
        %p158 = pneg %p86
        %p159 = pneg %p83
        %p160 = scmp.lt.s32.totalorder %s18, 1
        %s161 = scalar_select %p160, %s18, 1
        %s162 = smul.addr %s161, 32
        %s163 = smul.addr %s162, 8
        %s164 = scalar_lea.vmem %s2, %s163
        %p165 = pneg %p112
        %p166 = pneg %p109
        %s167 = sand.u32 %s99, 1
        %s168 = scalar_lea.sflag [#allocation4], %s167
        %s169 = sand.u32 %s99, 1
        %s170 = smul.addr %s169, 2
        %s171 = scalar_lea.vmem [#allocation3], %s170
        %p172 = scmp.lt.s32.totalorder %s18, 1
        %s173 = scalar_select %p172, %s18, 1
        %s174 = smul.addr %s173, 32
        %s175 = smul.addr %s174, 8
        %s176 = scalar_lea.vmem %s0, %s175
        %p177 = scmp.lt.s32.totalorder %s18, 1
        %s178 = scalar_select %p177, %s18, 1
        %s179 = smul.addr %s178, 32
        %s180 = smul.addr %s179, 8
        %s181 = scalar_lea.vmem %s2, %s180
        %v182 = vld [vmem:[%s176] sm:$0xff]
        %v183 = vld [vmem:[%s176 + $0x8] sm:$0xff]
        %v184 = vld [vmem:[%s176 + $0x10] sm:$0xff]
        %v185 = vld [vmem:[%s176 + $0x18] sm:$0xff]
        %v186 = vld [vmem:[%s176 + $0x20] sm:$0xff]
        %v187 = vld [vmem:[%s176 + $0x28] sm:$0xff]
        %v188 = vld [vmem:[%s176 + $0x30] sm:$0xff]
        %v189 = vld [vmem:[%s176 + $0x38] sm:$0xff]
        %v190 = vld [vmem:[%s176 + $0x40] sm:$0xff]
        %v191 = vld [vmem:[%s176 + $0x48] sm:$0xff]
        %v192 = vld [vmem:[%s176 + $0x50] sm:$0xff]
        %v193 = vld [vmem:[%s176 + $0x58] sm:$0xff]
        %v194 = vld [vmem:[%s176 + $0x60] sm:$0xff]
        %v195 = vld [vmem:[%s176 + $0x68] sm:$0xff]
        %v196 = vld [vmem:[%s176 + $0x70] sm:$0xff]
        %v197 = vld [vmem:[%s176 + $0x78] sm:$0xff]
        %v198 = vld [vmem:[%s176 + $0x80] sm:$0xff]
        %v199 = vld [vmem:[%s176 + $0x88] sm:$0xff]
        %v200 = vld [vmem:[%s176 + $0x90] sm:$0xff]
        %v201 = vld [vmem:[%s176 + $0x98] sm:$0xff]
        %v202 = vld [vmem:[%s176 + $0xa0] sm:$0xff]
        %v203 = vld [vmem:[%s176 + $0xa8] sm:$0xff]
        %v204 = vld [vmem:[%s176 + $0xb0] sm:$0xff]
        %v205 = vld [vmem:[%s176 + $0xb8] sm:$0xff]
        %v206 = vld [vmem:[%s176 + $0xc0] sm:$0xff]
        %v207 = vld [vmem:[%s176 + $0xc8] sm:$0xff]
        %v208 = vld [vmem:[%s176 + $0xd0] sm:$0xff]
        %v209 = vld [vmem:[%s176 + $0xd8] sm:$0xff]
        %v210 = vld [vmem:[%s176 + $0xe0] sm:$0xff]
        %v211 = vld [vmem:[%s176 + $0xe8] sm:$0xff]
        %v212 = vld [vmem:[%s176 + $0xf0] sm:$0xff]
        %v213 = vld [vmem:[%s176 + $0xf8] sm:$0xff]
        %v214 = vld [vmem:[%s1] sm:$0xff]
        %v215 = vld [vmem:[%s1 + $0x8] sm:$0xff]
        %v216 = vld [vmem:[%s1 + $0x10] sm:$0xff]
        %v217 = vld [vmem:[%s1 + $0x18] sm:$0xff]
        %v218 = vld [vmem:[%s1 + $0x20] sm:$0xf]
        %vm219 = vcmask 293888
        %220 = vst.msk [vmem:[#allocation2] sm:$0xff] %vm219, 0.0
        %221 = vst.msk [vmem:[#allocation2 + $0x8] sm:$0xff] %vm219, 0.0
        %222 = vst.msk [vmem:[#allocation2 + $0x10] sm:$0xff] %vm219, 0.0
        %223 = vst.msk [vmem:[#allocation2 + $0x18] sm:$0xff] %vm219, 0.0
        %224 = vst.msk [vmem:[#allocation2 + $0x20] sm:$0xff] %vm219, 0.0
        %225 = vst.msk [vmem:[#allocation2 + $0x28] sm:$0xff] %vm219, 0.0
        %226 = vst.msk [vmem:[#allocation2 + $0x30] sm:$0xff] %vm219, 0.0
        %227 = vst.msk [vmem:[#allocation2 + $0x38] sm:$0xff] %vm219, 0.0
        %228 = vst.msk [vmem:[#allocation2 + $0x40] sm:$0xff] %vm219, 0.0
        %229 = vst.msk [vmem:[#allocation2 + $0x48] sm:$0xff] %vm219, 0.0
        %230 = vst.msk [vmem:[#allocation2 + $0x50] sm:$0xff] %vm219, 0.0
        %231 = vst.msk [vmem:[#allocation2 + $0x58] sm:$0xff] %vm219, 0.0
        %232 = vst.msk [vmem:[#allocation2 + $0x60] sm:$0xff] %vm219, 0.0
        %233 = vst.msk [vmem:[#allocation2 + $0x68] sm:$0xff] %vm219, 0.0
        %234 = vst.msk [vmem:[#allocation2 + $0x70] sm:$0xff] %vm219, 0.0
        %235 = vst.msk [vmem:[#allocation2 + $0x78] sm:$0xff] %vm219, 0.0
        %s236 = scalar_lea.vmem [#allocation2], 16
        %vm237 = vcmask 31744
        %238 = vst.msk [vmem:[%s236 + $0x1] sm:$0xff] %vm237, %v182
        %vm239 = vcmask 30720
        %240 = vst.msk [vmem:[%s236 + $0x9] sm:$0x7f] %vm239, %v183
        %241 = vst.msk [vmem:[%s236 + $0x11] sm:$0xff] %vm237, %v184
        %242 = vst.msk [vmem:[%s236 + $0x19] sm:$0x7f] %vm239, %v185
        %243 = vst.msk [vmem:[%s236 + $0x21] sm:$0xff] %vm237, %v186
        %244 = vst.msk [vmem:[%s236 + $0x29] sm:$0x7f] %vm239, %v187
        %245 = vst.msk [vmem:[%s236 + $0x31] sm:$0xff] %vm237, %v188
        %246 = vst.msk [vmem:[%s236 + $0x39] sm:$0x7f] %vm239, %v189
        %247 = vst.msk [vmem:[%s236 + $0x41] sm:$0xff] %vm237, %v190
        %248 = vst.msk [vmem:[%s236 + $0x49] sm:$0x7f] %vm239, %v191
        %249 = vst.msk [vmem:[%s236 + $0x51] sm:$0xff] %vm237, %v192
        %250 = vst.msk [vmem:[%s236 + $0x59] sm:$0x7f] %vm239, %v193
        %251 = vst.msk [vmem:[%s236 + $0x61] sm:$0xff] %vm237, %v194
        %252 = vst.msk [vmem:[%s236 + $0x69] sm:$0x7f] %vm239, %v195
        %267 = vrot.lane.b32.xlu0 %v182, 4
        %v268 = vpop.permute.xlu0 %267
        %269 = vrot.lane.b32.xlu0 %v183, 4
        %v270 = vpop.permute.xlu0 %269
        %271 = vrot.lane.b32.xlu0 %v184, 4
        %v272 = vpop.permute.xlu0 %271
        %273 = vrot.lane.b32.xlu0 %v185, 4
        %v274 = vpop.permute.xlu0 %273
        %275 = vrot.lane.b32.xlu0 %v186, 4
        %v276 = vpop.permute.xlu0 %275
        %277 = vrot.lane.b32.xlu0 %v187, 4
        %v278 = vpop.permute.xlu0 %277
        %279 = vrot.lane.b32.xlu0 %v188, 4
        %v280 = vpop.permute.xlu0 %279
        %281 = vrot.lane.b32.xlu0 %v189, 4
        %v282 = vpop.permute.xlu0 %281
        %283 = vrot.lane.b32.xlu0 %v190, 4
        %v284 = vpop.permute.xlu0 %283
        %285 = vrot.lane.b32.xlu0 %v191, 4
        %v286 = vpop.permute.xlu0 %285
        %287 = vrot.lane.b32.xlu0 %v192, 4
        %v288 = vpop.permute.xlu0 %287
        %289 = vrot.lane.b32.xlu0 %v193, 4
        %v290 = vpop.permute.xlu0 %289
        %291 = vrot.lane.b32.xlu0 %v194, 4
        %v292 = vpop.permute.xlu0 %291
        %293 = vrot.lane.b32.xlu0 %v195, 4
        %v294 = vpop.permute.xlu0 %293
        %vm309 = vcmask 64544
        %310 = vst.msk [vmem:[%s236] sm:$0xff] %vm309, %v268
        %311 = vst.msk [vmem:[%s236 + $0x8] sm:$0xff] %vm309, %v270
        %312 = vst.msk [vmem:[%s236 + $0x10] sm:$0xff] %vm309, %v272
        %313 = vst.msk [vmem:[%s236 + $0x18] sm:$0xff] %vm309, %v274
        %314 = vst.msk [vmem:[%s236 + $0x20] sm:$0xff] %vm309, %v276
        %315 = vst.msk [vmem:[%s236 + $0x28] sm:$0xff] %vm309, %v278
        %316 = vst.msk [vmem:[%s236 + $0x30] sm:$0xff] %vm309, %v280
        %317 = vst.msk [vmem:[%s236 + $0x38] sm:$0xff] %vm309, %v282
        %318 = vst.msk [vmem:[%s236 + $0x40] sm:$0xff] %vm309, %v284
        %319 = vst.msk [vmem:[%s236 + $0x48] sm:$0xff] %vm309, %v286
        %320 = vst.msk [vmem:[%s236 + $0x50] sm:$0xff] %vm309, %v288
        %321 = vst.msk [vmem:[%s236 + $0x58] sm:$0xff] %vm309, %v290
        %322 = vst.msk [vmem:[%s236 + $0x60] sm:$0xff] %vm309, %v292
        %323 = vst.msk [vmem:[%s236 + $0x68] sm:$0xff] %vm309, %v294
        %324 = vrot.lane.b32.xlu0 %v182, 8
        %v325 = vpop.permute.xlu0 %324
        %326 = vrot.lane.b32.xlu0 %v183, 8
        %v327 = vpop.permute.xlu0 %326
        %328 = vrot.lane.b32.xlu0 %v184, 8
        %v329 = vpop.permute.xlu0 %328
        %330 = vrot.lane.b32.xlu0 %v185, 8
        %v331 = vpop.permute.xlu0 %330
        %332 = vrot.lane.b32.xlu0 %v186, 8
        %v333 = vpop.permute.xlu0 %332
        %334 = vrot.lane.b32.xlu0 %v187, 8
        %v335 = vpop.permute.xlu0 %334
        %336 = vrot.lane.b32.xlu0 %v188, 8
        %v337 = vpop.permute.xlu0 %336
        %338 = vrot.lane.b32.xlu0 %v189, 8
        %v339 = vpop.permute.xlu0 %338
        %340 = vrot.lane.b32.xlu0 %v190, 8
        %v341 = vpop.permute.xlu0 %340
        %342 = vrot.lane.b32.xlu0 %v191, 8
        %v343 = vpop.permute.xlu0 %342
        %344 = vrot.lane.b32.xlu0 %v192, 8
        %v345 = vpop.permute.xlu0 %344
        %346 = vrot.lane.b32.xlu0 %v193, 8
        %v347 = vpop.permute.xlu0 %346
        %348 = vrot.lane.b32.xlu0 %v194, 8
        %v349 = vpop.permute.xlu0 %348
        %350 = vrot.lane.b32.xlu0 %v195, 8
        %v351 = vpop.permute.xlu0 %350
        %vm366 = vcmask 97345
        %367 = vst.msk [vmem:[%s236 - $0x1] sm:$0xfe] %vm366, %v325
        %vm368 = vcmask 97344
        %369 = vst.msk [vmem:[%s236 + $0x7] sm:$0xff] %vm368, %v327
        %370 = vst.msk [vmem:[%s236 + $0xf] sm:$0xfe] %vm366, %v329
        %371 = vst.msk [vmem:[%s236 + $0x17] sm:$0xff] %vm368, %v331
        %372 = vst.msk [vmem:[%s236 + $0x1f] sm:$0xfe] %vm366, %v333
        %373 = vst.msk [vmem:[%s236 + $0x27] sm:$0xff] %vm368, %v335
        %374 = vst.msk [vmem:[%s236 + $0x2f] sm:$0xfe] %vm366, %v337
        %375 = vst.msk [vmem:[%s236 + $0x37] sm:$0xff] %vm368, %v339
        %376 = vst.msk [vmem:[%s236 + $0x3f] sm:$0xfe] %vm366, %v341
        %377 = vst.msk [vmem:[%s236 + $0x47] sm:$0xff] %vm368, %v343
        %378 = vst.msk [vmem:[%s236 + $0x4f] sm:$0xfe] %vm366, %v345
        %379 = vst.msk [vmem:[%s236 + $0x57] sm:$0xff] %vm368, %v347
        %380 = vst.msk [vmem:[%s236 + $0x5f] sm:$0xfe] %vm366, %v349
        %381 = vst.msk [vmem:[%s236 + $0x67] sm:$0xff] %vm368, %v351
        %384 = vrot.lane.b32.xlu0 %v182, 12
        %v385 = vpop.permute.xlu0 %384
        %386 = vrot.lane.b32.xlu0 %v183, 12
        %v387 = vpop.permute.xlu0 %386
        %388 = vrot.lane.b32.xlu0 %v184, 12
        %v389 = vpop.permute.xlu0 %388
        %390 = vrot.lane.b32.xlu0 %v185, 12
        %v391 = vpop.permute.xlu0 %390
        %392 = vrot.lane.b32.xlu0 %v186, 12
        %v393 = vpop.permute.xlu0 %392
        %394 = vrot.lane.b32.xlu0 %v187, 12
        %v395 = vpop.permute.xlu0 %394
        %396 = vrot.lane.b32.xlu0 %v188, 12
        %v397 = vpop.permute.xlu0 %396
        %398 = vrot.lane.b32.xlu0 %v189, 12
        %v399 = vpop.permute.xlu0 %398
        %400 = vrot.lane.b32.xlu0 %v190, 12
        %v401 = vpop.permute.xlu0 %400
        %402 = vrot.lane.b32.xlu0 %v191, 12
        %v403 = vpop.permute.xlu0 %402
        %404 = vrot.lane.b32.xlu0 %v192, 12
        %v405 = vpop.permute.xlu0 %404
        %406 = vrot.lane.b32.xlu0 %v193, 12
        %v407 = vpop.permute.xlu0 %406
        %408 = vrot.lane.b32.xlu0 %v194, 12
        %v409 = vpop.permute.xlu0 %408
        %410 = vrot.lane.b32.xlu0 %v195, 12
        %v411 = vpop.permute.xlu0 %410
        %412 = vrot.lane.b32.xlu0 %v196, 12
        %v413 = vpop.permute.xlu0 %412
        %414 = vrot.lane.b32.xlu0 %v197, 12
        %v415 = vpop.permute.xlu0 %414
        %vm432 = vcmask 130144
        %433 = vst.msk [vmem:[#allocation2 + $0x1] sm:$0xff] %vm432, %v385
        %vm434 = vcmask 129120
        %435 = vst.msk [vmem:[#allocation2 + $0x9] sm:$0x7f] %vm434, %v387
        %436 = vst.msk [vmem:[#allocation2 + $0x11] sm:$0xff] %vm432, %v389
        %437 = vst.msk [vmem:[#allocation2 + $0x19] sm:$0x7f] %vm434, %v391
        %438 = vst.msk [vmem:[#allocation2 + $0x21] sm:$0xff] %vm432, %v393
        %439 = vst.msk [vmem:[#allocation2 + $0x29] sm:$0x7f] %vm434, %v395
        %440 = vst.msk [vmem:[#allocation2 + $0x31] sm:$0xff] %vm432, %v397
        %441 = vst.msk [vmem:[#allocation2 + $0x39] sm:$0x7f] %vm434, %v399
        %442 = vst.msk [vmem:[#allocation2 + $0x41] sm:$0xff] %vm432, %v401
        %443 = vst.msk [vmem:[#allocation2 + $0x49] sm:$0x7f] %vm434, %v403
        %444 = vst.msk [vmem:[#allocation2 + $0x51] sm:$0xff] %vm432, %v405
        %445 = vst.msk [vmem:[#allocation2 + $0x59] sm:$0x7f] %vm434, %v407
        %446 = vst.msk [vmem:[#allocation2 + $0x61] sm:$0xff] %vm432, %v409
        %447 = vst.msk [vmem:[#allocation2 + $0x69] sm:$0x7f] %vm434, %v411
        %448 = vst.msk [vmem:[#allocation2 + $0x71] sm:$0xff] %vm432, %v413
        %449 = vst.msk [vmem:[#allocation2 + $0x79] sm:$0x7f] %vm434, %v415
        %450 = vrot.lane.b32.xlu0 %v182, 16
        %v451 = vpop.permute.xlu0 %450
        %452 = vrot.lane.b32.xlu0 %v183, 16
        %v453 = vpop.permute.xlu0 %452
        %454 = vrot.lane.b32.xlu0 %v184, 16
        %v455 = vpop.permute.xlu0 %454
        %456 = vrot.lane.b32.xlu0 %v185, 16
        %v457 = vpop.permute.xlu0 %456
        %458 = vrot.lane.b32.xlu0 %v186, 16
        %v459 = vpop.permute.xlu0 %458
        %460 = vrot.lane.b32.xlu0 %v187, 16
        %v461 = vpop.permute.xlu0 %460
        %462 = vrot.lane.b32.xlu0 %v188, 16
        %v463 = vpop.permute.xlu0 %462
        %464 = vrot.lane.b32.xlu0 %v189, 16
        %v465 = vpop.permute.xlu0 %464
        %466 = vrot.lane.b32.xlu0 %v190, 16
        %v467 = vpop.permute.xlu0 %466
        %468 = vrot.lane.b32.xlu0 %v191, 16
        %v469 = vpop.permute.xlu0 %468
        %470 = vrot.lane.b32.xlu0 %v192, 16
        %v471 = vpop.permute.xlu0 %470
        %472 = vrot.lane.b32.xlu0 %v193, 16
        %v473 = vpop.permute.xlu0 %472
        %474 = vrot.lane.b32.xlu0 %v194, 16
        %v475 = vpop.permute.xlu0 %474
        %476 = vrot.lane.b32.xlu0 %v195, 16
        %v477 = vpop.permute.xlu0 %476
        %478 = vrot.lane.b32.xlu0 %v196, 16
        %v479 = vpop.permute.xlu0 %478
        %480 = vrot.lane.b32.xlu0 %v197, 16
        %v481 = vpop.permute.xlu0 %480
        %vm498 = vcmask 162944
        %499 = vst.msk [vmem:[#allocation2] sm:$0xff] %vm498, %v451
        %500 = vst.msk [vmem:[#allocation2 + $0x8] sm:$0xff] %vm498, %v453
        %501 = vst.msk [vmem:[#allocation2 + $0x10] sm:$0xff] %vm498, %v455
        %502 = vst.msk [vmem:[#allocation2 + $0x18] sm:$0xff] %vm498, %v457
        %503 = vst.msk [vmem:[#allocation2 + $0x20] sm:$0xff] %vm498, %v459
        %504 = vst.msk [vmem:[#allocation2 + $0x28] sm:$0xff] %vm498, %v461
        %505 = vst.msk [vmem:[#allocation2 + $0x30] sm:$0xff] %vm498, %v463
        %506 = vst.msk [vmem:[#allocation2 + $0x38] sm:$0xff] %vm498, %v465
        %507 = vst.msk [vmem:[#allocation2 + $0x40] sm:$0xff] %vm498, %v467
        %508 = vst.msk [vmem:[#allocation2 + $0x48] sm:$0xff] %vm498, %v469
        %509 = vst.msk [vmem:[#allocation2 + $0x50] sm:$0xff] %vm498, %v471
        %510 = vst.msk [vmem:[#allocation2 + $0x58] sm:$0xff] %vm498, %v473
        %511 = vst.msk [vmem:[#allocation2 + $0x60] sm:$0xff] %vm498, %v475
        %512 = vst.msk [vmem:[#allocation2 + $0x68] sm:$0xff] %vm498, %v477
        %513 = vst.msk [vmem:[#allocation2 + $0x70] sm:$0xff] %vm498, %v479
        %514 = vst.msk [vmem:[#allocation2 + $0x78] sm:$0xff] %vm498, %v481
        %515 = vrot.lane.b32.xlu0 %v182, 20
        %v516 = vpop.permute.xlu0 %515
        %517 = vrot.lane.b32.xlu0 %v183, 20
        %v518 = vpop.permute.xlu0 %517
        %519 = vrot.lane.b32.xlu0 %v184, 20
        %v520 = vpop.permute.xlu0 %519
        %521 = vrot.lane.b32.xlu0 %v185, 20
        %v522 = vpop.permute.xlu0 %521
        %523 = vrot.lane.b32.xlu0 %v186, 20
        %v524 = vpop.permute.xlu0 %523
        %525 = vrot.lane.b32.xlu0 %v187, 20
        %v526 = vpop.permute.xlu0 %525
        %527 = vrot.lane.b32.xlu0 %v188, 20
        %v528 = vpop.permute.xlu0 %527
        %529 = vrot.lane.b32.xlu0 %v189, 20
        %v530 = vpop.permute.xlu0 %529
        %531 = vrot.lane.b32.xlu0 %v190, 20
        %v532 = vpop.permute.xlu0 %531
        %533 = vrot.lane.b32.xlu0 %v191, 20
        %v534 = vpop.permute.xlu0 %533
        %535 = vrot.lane.b32.xlu0 %v192, 20
        %v536 = vpop.permute.xlu0 %535
        %537 = vrot.lane.b32.xlu0 %v193, 20
        %v538 = vpop.permute.xlu0 %537
        %539 = vrot.lane.b32.xlu0 %v194, 20
        %v540 = vpop.permute.xlu0 %539
        %541 = vrot.lane.b32.xlu0 %v195, 20
        %v542 = vpop.permute.xlu0 %541
        %543 = vrot.lane.b32.xlu0 %v196, 20
        %v544 = vpop.permute.xlu0 %543
        %545 = vrot.lane.b32.xlu0 %v197, 20
        %v546 = vpop.permute.xlu0 %545
        %vm563 = vcmask 195745
        %564 = vst.msk [vmem:[#allocation2 - $0x1] sm:$0xfe] %vm563, %v516
        %vm565 = vcmask 195744
        %566 = vst.msk [vmem:[#allocation2 + $0x7] sm:$0xff] %vm565, %v518
        %567 = vst.msk [vmem:[#allocation2 + $0xf] sm:$0xfe] %vm563, %v520
        %568 = vst.msk [vmem:[#allocation2 + $0x17] sm:$0xff] %vm565, %v522
        %569 = vst.msk [vmem:[#allocation2 + $0x1f] sm:$0xfe] %vm563, %v524
        %570 = vst.msk [vmem:[#allocation2 + $0x27] sm:$0xff] %vm565, %v526
        %571 = vst.msk [vmem:[#allocation2 + $0x2f] sm:$0xfe] %vm563, %v528
        %572 = vst.msk [vmem:[#allocation2 + $0x37] sm:$0xff] %vm565, %v530
        %573 = vst.msk [vmem:[#allocation2 + $0x3f] sm:$0xfe] %vm563, %v532
        %574 = vst.msk [vmem:[#allocation2 + $0x47] sm:$0xff] %vm565, %v534
        %575 = vst.msk [vmem:[#allocation2 + $0x4f] sm:$0xfe] %vm563, %v536
        %576 = vst.msk [vmem:[#allocation2 + $0x57] sm:$0xff] %vm565, %v538
        %577 = vst.msk [vmem:[#allocation2 + $0x5f] sm:$0xfe] %vm563, %v540
        %578 = vst.msk [vmem:[#allocation2 + $0x67] sm:$0xff] %vm565, %v542
        %579 = vst.msk [vmem:[#allocation2 + $0x6f] sm:$0xfe] %vm563, %v544
        %580 = vst.msk [vmem:[#allocation2 + $0x77] sm:$0xff] %vm565, %v546
        %583 = vrot.lane.b32.xlu0 %v184, 24
        %v584 = vpop.permute.xlu0 %583
        %585 = vrot.lane.b32.xlu0 %v185, 24
        %v586 = vpop.permute.xlu0 %585
        %587 = vrot.lane.b32.xlu0 %v186, 24
        %v588 = vpop.permute.xlu0 %587
        %589 = vrot.lane.b32.xlu0 %v187, 24
        %v590 = vpop.permute.xlu0 %589
        %591 = vrot.lane.b32.xlu0 %v188, 24
        %v592 = vpop.permute.xlu0 %591
        %593 = vrot.lane.b32.xlu0 %v189, 24
        %v594 = vpop.permute.xlu0 %593
        %595 = vrot.lane.b32.xlu0 %v190, 24
        %v596 = vpop.permute.xlu0 %595
        %597 = vrot.lane.b32.xlu0 %v191, 24
        %v598 = vpop.permute.xlu0 %597
        %599 = vrot.lane.b32.xlu0 %v192, 24
        %v600 = vpop.permute.xlu0 %599
        %601 = vrot.lane.b32.xlu0 %v193, 24
        %v602 = vpop.permute.xlu0 %601
        %603 = vrot.lane.b32.xlu0 %v194, 24
        %v604 = vpop.permute.xlu0 %603
        %605 = vrot.lane.b32.xlu0 %v195, 24
        %v606 = vpop.permute.xlu0 %605
        %607 = vrot.lane.b32.xlu0 %v196, 24
        %v608 = vpop.permute.xlu0 %607
        %609 = vrot.lane.b32.xlu0 %v197, 24
        %v610 = vpop.permute.xlu0 %609
        %611 = vrot.lane.b32.xlu0 %v198, 24
        %v612 = vpop.permute.xlu0 %611
        %613 = vrot.lane.b32.xlu0 %v199, 24
        %v614 = vpop.permute.xlu0 %613
        %vm631 = vcmask 228544
        %632 = vst.msk [vmem:[#allocation2 + $0x1] sm:$0xff] %vm631, %v584
        %vm633 = vcmask 227520
        %634 = vst.msk [vmem:[#allocation2 + $0x9] sm:$0x7f] %vm633, %v586
        %635 = vst.msk [vmem:[#allocation2 + $0x11] sm:$0xff] %vm631, %v588
        %636 = vst.msk [vmem:[#allocation2 + $0x19] sm:$0x7f] %vm633, %v590
        %637 = vst.msk [vmem:[#allocation2 + $0x21] sm:$0xff] %vm631, %v592
        %638 = vst.msk [vmem:[#allocation2 + $0x29] sm:$0x7f] %vm633, %v594
        %639 = vst.msk [vmem:[#allocation2 + $0x31] sm:$0xff] %vm631, %v596
        %640 = vst.msk [vmem:[#allocation2 + $0x39] sm:$0x7f] %vm633, %v598
        %641 = vst.msk [vmem:[#allocation2 + $0x41] sm:$0xff] %vm631, %v600
        %642 = vst.msk [vmem:[#allocation2 + $0x49] sm:$0x7f] %vm633, %v602
        %643 = vst.msk [vmem:[#allocation2 + $0x51] sm:$0xff] %vm631, %v604
        %644 = vst.msk [vmem:[#allocation2 + $0x59] sm:$0x7f] %vm633, %v606
        %645 = vst.msk [vmem:[#allocation2 + $0x61] sm:$0xff] %vm631, %v608
        %646 = vst.msk [vmem:[#allocation2 + $0x69] sm:$0x7f] %vm633, %v610
        %647 = vst.msk [vmem:[#allocation2 + $0x71] sm:$0xff] %vm631, %v612
        %648 = vst.msk [vmem:[#allocation2 + $0x79] sm:$0x7f] %vm633, %v614
        %649 = vrot.lane.b32.xlu0 %v184, 28
        %v650 = vpop.permute.xlu0 %649
        %651 = vrot.lane.b32.xlu0 %v185, 28
        %v652 = vpop.permute.xlu0 %651
        %653 = vrot.lane.b32.xlu0 %v186, 28
        %v654 = vpop.permute.xlu0 %653
        %655 = vrot.lane.b32.xlu0 %v187, 28
        %v656 = vpop.permute.xlu0 %655
        %657 = vrot.lane.b32.xlu0 %v188, 28
        %v658 = vpop.permute.xlu0 %657
        %659 = vrot.lane.b32.xlu0 %v189, 28
        %v660 = vpop.permute.xlu0 %659
        %661 = vrot.lane.b32.xlu0 %v190, 28
        %v662 = vpop.permute.xlu0 %661
        %663 = vrot.lane.b32.xlu0 %v191, 28
        %v664 = vpop.permute.xlu0 %663
        %665 = vrot.lane.b32.xlu0 %v192, 28
        %v666 = vpop.permute.xlu0 %665
        %667 = vrot.lane.b32.xlu0 %v193, 28
        %v668 = vpop.permute.xlu0 %667
        %669 = vrot.lane.b32.xlu0 %v194, 28
        %v670 = vpop.permute.xlu0 %669
        %671 = vrot.lane.b32.xlu0 %v195, 28
        %v672 = vpop.permute.xlu0 %671
        %673 = vrot.lane.b32.xlu0 %v196, 28
        %v674 = vpop.permute.xlu0 %673
        %675 = vrot.lane.b32.xlu0 %v197, 28
        %v676 = vpop.permute.xlu0 %675
        %677 = vrot.lane.b32.xlu0 %v198, 28
        %v678 = vpop.permute.xlu0 %677
        %679 = vrot.lane.b32.xlu0 %v199, 28
        %v680 = vpop.permute.xlu0 %679
        %vm697 = vcmask 261344
        %698 = vst.msk [vmem:[#allocation2] sm:$0xff] %vm697, %v650
        %699 = vst.msk [vmem:[#allocation2 + $0x8] sm:$0xff] %vm697, %v652
        %700 = vst.msk [vmem:[#allocation2 + $0x10] sm:$0xff] %vm697, %v654
        %701 = vst.msk [vmem:[#allocation2 + $0x18] sm:$0xff] %vm697, %v656
        %702 = vst.msk [vmem:[#allocation2 + $0x20] sm:$0xff] %vm697, %v658
        %703 = vst.msk [vmem:[#allocation2 + $0x28] sm:$0xff] %vm697, %v660
        %704 = vst.msk [vmem:[#allocation2 + $0x30] sm:$0xff] %vm697, %v662
        %705 = vst.msk [vmem:[#allocation2 + $0x38] sm:$0xff] %vm697, %v664
        %706 = vst.msk [vmem:[#allocation2 + $0x40] sm:$0xff] %vm697, %v666
        %707 = vst.msk [vmem:[#allocation2 + $0x48] sm:$0xff] %vm697, %v668
        %708 = vst.msk [vmem:[#allocation2 + $0x50] sm:$0xff] %vm697, %v670
        %709 = vst.msk [vmem:[#allocation2 + $0x58] sm:$0xff] %vm697, %v672
        %710 = vst.msk [vmem:[#allocation2 + $0x60] sm:$0xff] %vm697, %v674
        %711 = vst.msk [vmem:[#allocation2 + $0x68] sm:$0xff] %vm697, %v676
        %712 = vst.msk [vmem:[#allocation2 + $0x70] sm:$0xff] %vm697, %v678
        %713 = vst.msk [vmem:[#allocation2 + $0x78] sm:$0xff] %vm697, %v680
        %714 = vrot.lane.b32.xlu0 %v184, 32
        %v715 = vpop.permute.xlu0 %714
        %716 = vrot.lane.b32.xlu0 %v185, 32
        %v717 = vpop.permute.xlu0 %716
        %718 = vrot.lane.b32.xlu0 %v186, 32
        %v719 = vpop.permute.xlu0 %718
        %720 = vrot.lane.b32.xlu0 %v187, 32
        %v721 = vpop.permute.xlu0 %720
        %722 = vrot.lane.b32.xlu0 %v188, 32
        %v723 = vpop.permute.xlu0 %722
        %724 = vrot.lane.b32.xlu0 %v189, 32
        %v725 = vpop.permute.xlu0 %724
        %726 = vrot.lane.b32.xlu0 %v190, 32
        %v727 = vpop.permute.xlu0 %726
        %728 = vrot.lane.b32.xlu0 %v191, 32
        %v729 = vpop.permute.xlu0 %728
        %730 = vrot.lane.b32.xlu0 %v192, 32
        %v731 = vpop.permute.xlu0 %730
        %732 = vrot.lane.b32.xlu0 %v193, 32
        %v733 = vpop.permute.xlu0 %732
        %734 = vrot.lane.b32.xlu0 %v194, 32
        %v735 = vpop.permute.xlu0 %734
        %736 = vrot.lane.b32.xlu0 %v195, 32
        %v737 = vpop.permute.xlu0 %736
        %738 = vrot.lane.b32.xlu0 %v196, 32
        %v739 = vpop.permute.xlu0 %738
        %740 = vrot.lane.b32.xlu0 %v197, 32
        %v741 = vpop.permute.xlu0 %740
        %742 = vrot.lane.b32.xlu0 %v198, 32
        %v743 = vpop.permute.xlu0 %742
        %744 = vrot.lane.b32.xlu0 %v199, 32
        %v745 = vpop.permute.xlu0 %744
        %vm762 = vcmask 294145
        %763 = vst.msk [vmem:[#allocation2 - $0x1] sm:$0xfe] %vm762, %v715
        %vm764 = vcmask 294144
        %765 = vst.msk [vmem:[#allocation2 + $0x7] sm:$0xff] %vm764, %v717
        %766 = vst.msk [vmem:[#allocation2 + $0xf] sm:$0xfe] %vm762, %v719
        %767 = vst.msk [vmem:[#allocation2 + $0x17] sm:$0xff] %vm764, %v721
        %768 = vst.msk [vmem:[#allocation2 + $0x1f] sm:$0xfe] %vm762, %v723
        %769 = vst.msk [vmem:[#allocation2 + $0x27] sm:$0xff] %vm764, %v725
        %770 = vst.msk [vmem:[#allocation2 + $0x2f] sm:$0xfe] %vm762, %v727
        %771 = vst.msk [vmem:[#allocation2 + $0x37] sm:$0xff] %vm764, %v729
        %772 = vst.msk [vmem:[#allocation2 + $0x3f] sm:$0xfe] %vm762, %v731
        %773 = vst.msk [vmem:[#allocation2 + $0x47] sm:$0xff] %vm764, %v733
        %774 = vst.msk [vmem:[#allocation2 + $0x4f] sm:$0xfe] %vm762, %v735
        %775 = vst.msk [vmem:[#allocation2 + $0x57] sm:$0xff] %vm764, %v737
        %776 = vst.msk [vmem:[#allocation2 + $0x5f] sm:$0xfe] %vm762, %v739
        %777 = vst.msk [vmem:[#allocation2 + $0x67] sm:$0xff] %vm764, %v741
        %778 = vst.msk [vmem:[#allocation2 + $0x6f] sm:$0xfe] %vm762, %v743
        %779 = vst.msk [vmem:[#allocation2 + $0x77] sm:$0xff] %vm764, %v745
        %v780 = vld [vmem:[#allocation2] sm:$0xff]
        %v781 = vld [vmem:[#allocation2 + $0x8] sm:$0xff]
        %v782 = vld [vmem:[#allocation2 + $0x10] sm:$0xff]
        %v783 = vld [vmem:[#allocation2 + $0x18] sm:$0xff]
        %v784 = vld [vmem:[#allocation2 + $0x20] sm:$0xff]
        %v785 = vld [vmem:[#allocation2 + $0x28] sm:$0xff]
        %v786 = vld [vmem:[#allocation2 + $0x30] sm:$0xff]
        %v787 = vld [vmem:[#allocation2 + $0x38] sm:$0xff]
        %v788 = vld [vmem:[#allocation2 + $0x40] sm:$0xff]
        %v789 = vld [vmem:[#allocation2 + $0x48] sm:$0xff]
        %v790 = vld [vmem:[#allocation2 + $0x50] sm:$0xff]
        %v791 = vld [vmem:[#allocation2 + $0x58] sm:$0xff]
        %v792 = vld [vmem:[#allocation2 + $0x60] sm:$0xff]
        %v793 = vld [vmem:[#allocation2 + $0x68] sm:$0xff]
        %v794 = vld [vmem:[#allocation2 + $0x70] sm:$0xff]
        %v795 = vld [vmem:[#allocation2 + $0x78] sm:$0xff]
        %v797 = vsel %vm219, %v780, 0
        %v800 = vsel %vm219, %v781, 0
        %v803 = vsel %vm219, %v782, 0
        %v806 = vsel %vm219, %v783, 0
        %v809 = vsel %vm219, %v784, 0
        %v812 = vsel %vm219, %v785, 0
        %v815 = vsel %vm219, %v786, 0
        %v818 = vsel %vm219, %v787, 0
        %v821 = vsel %vm219, %v788, 0
        %v824 = vsel %vm219, %v789, 0
        %v827 = vsel %vm219, %v790, 0
        %v830 = vsel %vm219, %v791, 0
        %v833 = vsel %vm219, %v792, 0
        %v836 = vsel %vm219, %v793, 0
        %v839 = vsel %vm219, %v794, 0
        %v842 = vsel %vm219, %v795, 0
        %vm844 = vcmask 1043456
        %v846 = vsel %vm844, %v218, 0
        %848 = vmatprep.subr.mxu0 0.0
        %849 = vmatpush1.msra.mxu0 %v214
        %850 = vmatprep.subr.mxu0 0.0
        %851 = vmatpush1.msra.mxu0 %v215
        %852 = vmatprep.subr.mxu0 0.0
        %853 = vmatpush1.msra.mxu0 %v216
        %854 = vmatprep.subr.mxu0 0.0
        %855 = vmatpush1.msra.mxu0 %v217
        %856 = vmatprep.subr.mxu0 0.0
        %857 = vmatpush1.msra.mxu0 %v846
        %858 = vmatprep.subr.mxu0 0.0
        %859 = vmatpush1.msra.mxu0 0.0
        %860 = vmatprep.subr.mxu0 0.0
        %861 = vmatpush1.msra.mxu0 0.0
        %862 = vmatprep.subr.mxu0 0.0
        %863 = vmatpush1.msra.mxu0 0.0
        %864 = vmatprep.subr.mxu0 0.0
        %865 = vmatpush1.msra.mxu0 0.0
        %866 = vmatprep.subr.mxu0 0.0
        %867 = vmatpush1.msra.mxu0 0.0
        %868 = vmatprep.subr.mxu0 0.0
        %869 = vmatpush1.msra.mxu0 0.0
        %870 = vmatprep.subr.mxu0 0.0
        %871 = vmatpush1.msra.mxu0 0.0
        %872 = vmatprep.subr.mxu0 0.0
        %873 = vmatpush1.msra.mxu0 0.0
        %874 = vmatprep.subr.mxu0 0.0
        %875 = vmatpush1.msra.mxu0 0.0
        %876 = vmatprep.subr.mxu0 0.0
        %877 = vmatpush1.msra.mxu0 0.0
        %878 = vmatprep.subr.mxu0 0.0
        %879 = vmatpush1.msra.mxu0 0.0
        %880 = vmatprep.subr.mxu0 0.0
        %881 = vmatpush1.msra.mxu0 0.0
        %882 = vmatprep.subr.mxu0 0.0
        %883 = vmatpush1.msra.mxu0 0.0
        %884 = vmatprep.subr.mxu0 0.0
        %885 = vmatpush1.msra.mxu0 0.0
        %886 = vmatprep.subr.mxu0 0.0
        %887 = vmatpush1.msra.mxu0 0.0
        %888 = vmatprep.subr.mxu0 0.0
        %889 = vmatpush1.msra.mxu0 0.0
        %890 = vmatprep.subr.mxu0 0.0
        %891 = vmatpush1.msra.mxu0 0.0
        %892 = vmatprep.subr.mxu0 0.0
        %893 = vmatpush1.msra.mxu0 0.0
        %894 = vmatprep.subr.mxu0 0.0
        %895 = vmatpush1.msra.mxu0 0.0
        %896 = vmatprep.subr.mxu0 0.0
        %897 = vmatpush1.msra.mxu0 0.0
        %898 = vmatprep.subr.mxu0 0.0
        %899 = vmatpush1.msra.mxu0 0.0
        %900 = vmatprep.subr.mxu0 0.0
        %901 = vmatpush1.msra.mxu0 0.0
        %902 = vmatprep.subr.mxu0 0.0
        %903 = vmatpush1.msra.mxu0 0.0
        %904 = vmatprep.subr.mxu0 0.0
        %905 = vmatpush1.msra.mxu0 0.0
        %906 = vmatprep.subr.mxu0 0.0
        %907 = vmatpush1.msra.mxu0 0.0
        %908 = vmatprep.subr.mxu0 0.0
        %909 = vmatpush1.msra.mxu0 0.0
        %910 = vmatprep.subr.mxu0 0.0
        %911 = vmatpush1.msra.mxu0 0.0
        %912 = vmatprep.mubr.f32.mxu0 0.0
        %913 = vmatmul.mubr.f32.gmra.mrb[0].mxu0 %v797
        %v914 = vpop.f32.mrb[0].mxu0
        %v915 = vadd.f32 0.0, %v914
        %v916 = vpop.f32.mrb[0].mxu0
        %917 = vmatprep.mubr.f32.mxu0 0.0
        %918 = vmatmul.mubr.f32.gmra.mrb[0].mxu0 %v800
        %v919 = vpop.f32.mrb[0].mxu0
        %v920 = vadd.f32 0.0, %v919
        %v921 = vpop.f32.mrb[0].mxu0
        %922 = vmatprep.mubr.f32.mxu0 0.0
        %923 = vmatmul.mubr.f32.gmra.mrb[0].mxu0 %v803
        %v924 = vpop.f32.mrb[0].mxu0
        %v925 = vadd.f32 0.0, %v924
        %v926 = vpop.f32.mrb[0].mxu0
        %927 = vmatprep.mubr.f32.mxu0 0.0
        %928 = vmatmul.mubr.f32.gmra.mrb[0].mxu0 %v806
        %v929 = vpop.f32.mrb[0].mxu0
        %v930 = vadd.f32 0.0, %v929
        %v931 = vpop.f32.mrb[0].mxu0
        %932 = vmatprep.mubr.f32.mxu0 0.0
        %933 = vmatmul.mubr.f32.gmra.mrb[0].mxu0 %v809
        %v934 = vpop.f32.mrb[0].mxu0
        %v935 = vadd.f32 0.0, %v934
        %v936 = vpop.f32.mrb[0].mxu0
        %937 = vmatprep.mubr.f32.mxu0 0.0
        %938 = vmatmul.mubr.f32.gmra.mrb[0].mxu0 %v812
        %v939 = vpop.f32.mrb[0].mxu0
        %v940 = vadd.f32 0.0, %v939
        %v941 = vpop.f32.mrb[0].mxu0
        %942 = vmatprep.mubr.f32.mxu0 0.0
        %943 = vmatmul.mubr.f32.gmra.mrb[0].mxu0 %v815
        %v944 = vpop.f32.mrb[0].mxu0
        %v945 = vadd.f32 0.0, %v944
        %v946 = vpop.f32.mrb[0].mxu0
        %947 = vmatprep.mubr.f32.mxu0 0.0
        %948 = vmatmul.mubr.f32.gmra.mrb[0].mxu0 %v818
        %v949 = vpop.f32.mrb[0].mxu0
        %v950 = vadd.f32 0.0, %v949
        %v951 = vpop.f32.mrb[0].mxu0
        %952 = vmatprep.mubr.f32.mxu0 0.0
        %953 = vmatmul.mubr.f32.gmra.mrb[0].mxu0 %v821
        %v954 = vpop.f32.mrb[0].mxu0
        %v955 = vadd.f32 0.0, %v954
        %v956 = vpop.f32.mrb[0].mxu0
        %957 = vmatprep.mubr.f32.mxu0 0.0
        %958 = vmatmul.mubr.f32.gmra.mrb[0].mxu0 %v824
        %v959 = vpop.f32.mrb[0].mxu0
        %v960 = vadd.f32 0.0, %v959
        %v961 = vpop.f32.mrb[0].mxu0
        %962 = vmatprep.mubr.f32.mxu0 0.0
        %963 = vmatmul.mubr.f32.gmra.mrb[0].mxu0 %v827
        %v964 = vpop.f32.mrb[0].mxu0
        %v965 = vadd.f32 0.0, %v964
        %v966 = vpop.f32.mrb[0].mxu0
        %967 = vmatprep.mubr.f32.mxu0 0.0
        %968 = vmatmul.mubr.f32.gmra.mrb[0].mxu0 %v830
        %v969 = vpop.f32.mrb[0].mxu0
        %v970 = vadd.f32 0.0, %v969
        %v971 = vpop.f32.mrb[0].mxu0
        %972 = vmatprep.mubr.f32.mxu0 0.0
        %973 = vmatmul.mubr.f32.gmra.mrb[0].mxu0 %v833
        %v974 = vpop.f32.mrb[0].mxu0
        %v975 = vadd.f32 0.0, %v974
        %v976 = vpop.f32.mrb[0].mxu0
        %977 = vmatprep.mubr.f32.mxu0 0.0
        %978 = vmatmul.mubr.f32.gmra.mrb[0].mxu0 %v836
        %v979 = vpop.f32.mrb[0].mxu0
        %v980 = vadd.f32 0.0, %v979
        %v981 = vpop.f32.mrb[0].mxu0
        %982 = vmatprep.mubr.f32.mxu0 0.0
        %983 = vmatmul.mubr.f32.gmra.mrb[0].mxu0 %v839
        %v984 = vpop.f32.mrb[0].mxu0
        %v985 = vadd.f32 0.0, %v984
        %v986 = vpop.f32.mrb[0].mxu0
        %987 = vmatprep.mubr.f32.mxu0 0.0
        %988 = vmatmul.mubr.f32.gmra.mrb[0].mxu0 %v842
        %v989 = vpop.f32.mrb[0].mxu0
        %v990 = vadd.f32 0.0, %v989
        %v991 = vpop.f32.mrb[0].mxu0
        %992 = vdwg.mxu0
        %vm993 = vcmask 64512
        %994 = vst.msk [vmem:[%s181] sm:$0xff] %vm993, %v915
        %995 = vst.msk [vmem:[%s181 + $0x8] sm:$0xff] %vm993, %v920
        %996 = vst.msk [vmem:[%s181 + $0x10] sm:$0xff] %vm993, %v925
        %997 = vst.msk [vmem:[%s181 + $0x18] sm:$0xff] %vm993, %v930
        %998 = vst.msk [vmem:[%s181 + $0x20] sm:$0xff] %vm993, %v935
        %999 = vst.msk [vmem:[%s181 + $0x28] sm:$0xff] %vm993, %v940
        %1000 = vst.msk [vmem:[%s181 + $0x30] sm:$0xff] %vm993, %v945
        %1001 = vst.msk [vmem:[%s181 + $0x38] sm:$0xff] %vm993, %v950
        %1002 = vst.msk [vmem:[%s181 + $0x40] sm:$0xff] %vm993, %v955
        %1003 = vst.msk [vmem:[%s181 + $0x48] sm:$0xff] %vm993, %v960
        %1004 = vst.msk [vmem:[%s181 + $0x50] sm:$0xff] %vm993, %v965
        %1005 = vst.msk [vmem:[%s181 + $0x58] sm:$0xff] %vm993, %v970
        %1006 = vst.msk [vmem:[%s181 + $0x60] sm:$0xff] %vm993, %v975
        %1007 = vst.msk [vmem:[%s181 + $0x68] sm:$0xff] %vm993, %v980
        %1008 = vst.msk [vmem:[%s181 + $0x70] sm:$0xff] %vm993, %v985
        %1009 = vst.msk [vmem:[%s181 + $0x78] sm:$0xff] %vm993, %v990
        %v1010 = vsel %vm993, %v915, 0.0
        %v1011 = vsel %vm993, %v920, 0.0
        %v1012 = vadd.f32 %v1010, %v1011
        %v1013 = vsel %vm993, %v925, 0.0
        %v1014 = vadd.f32 %v1012, %v1013
        %v1015 = vsel %vm993, %v930, 0.0
        %v1016 = vadd.f32 %v1014, %v1015
        %v1017 = vsel %vm993, %v935, 0.0
        %v1018 = vadd.f32 %v1016, %v1017
        %v1019 = vsel %vm993, %v940, 0.0
        %v1020 = vadd.f32 %v1018, %v1019
        %v1021 = vsel %vm993, %v945, 0.0
        %v1022 = vadd.f32 %v1020, %v1021
        %v1023 = vsel %vm993, %v950, 0.0
        %v1024 = vadd.f32 %v1022, %v1023
        %v1025 = vsel %vm993, %v955, 0.0
        %v1026 = vadd.f32 %v1024, %v1025
        %v1027 = vsel %vm993, %v960, 0.0
        %v1028 = vadd.f32 %v1026, %v1027
        %v1029 = vsel %vm993, %v965, 0.0
        %v1030 = vadd.f32 %v1028, %v1029
        %v1031 = vsel %vm993, %v970, 0.0
        %v1032 = vadd.f32 %v1030, %v1031
        %v1033 = vsel %vm993, %v975, 0.0
        %v1034 = vadd.f32 %v1032, %v1033
        %v1035 = vsel %vm993, %v980, 0.0
        %v1036 = vadd.f32 %v1034, %v1035
        %v1037 = vsel %vm993, %v985, 0.0
        %v1038 = vadd.f32 %v1036, %v1037
        %v1039 = vsel %vm993, %v990, 0.0
        %v1040 = vadd.f32 %v1038, %v1039
        %v1041 = vrot.slane %v1040, 4
        %v1042 = vadd.f32 %v1040, %v1041
        %v1043 = vrot.slane %v1042, 2
        %v1044 = vadd.f32 %v1042, %v1043
        %v1045 = vrot.slane %v1044, 1
        %v1046 = vadd.f32 %v1044, %v1045
        %v1047 = vadd.f32 %v1046, 0.0
        %v1048 = vmul.f32 %v915, %v915
        %v1049 = vmul.f32 %v920, %v920
        %v1050 = vmul.f32 %v925, %v925
        %v1051 = vmul.f32 %v930, %v930
        %v1052 = vmul.f32 %v935, %v935
        %v1053 = vmul.f32 %v940, %v940
        %v1054 = vmul.f32 %v945, %v945
        %v1055 = vmul.f32 %v950, %v950
        %v1056 = vmul.f32 %v955, %v955
        %v1057 = vmul.f32 %v960, %v960
        %v1058 = vmul.f32 %v965, %v965
        %v1059 = vmul.f32 %v970, %v970
        %v1060 = vmul.f32 %v975, %v975
        %v1061 = vmul.f32 %v980, %v980
        %v1062 = vmul.f32 %v985, %v985
        %v1063 = vmul.f32 %v990, %v990
        %v1064 = vsel %vm993, %v1048, 0.0
        %v1065 = vsel %vm993, %v1049, 0.0
        %v1066 = vadd.f32 %v1064, %v1065
        %v1067 = vsel %vm993, %v1050, 0.0
        %v1068 = vadd.f32 %v1066, %v1067
        %v1069 = vsel %vm993, %v1051, 0.0
        %v1070 = vadd.f32 %v1068, %v1069
        %v1071 = vsel %vm993, %v1052, 0.0
        %v1072 = vadd.f32 %v1070, %v1071
        %v1073 = vsel %vm993, %v1053, 0.0
        %v1074 = vadd.f32 %v1072, %v1073
        %v1075 = vsel %vm993, %v1054, 0.0
        %v1076 = vadd.f32 %v1074, %v1075
        %v1077 = vsel %vm993, %v1055, 0.0
        %v1078 = vadd.f32 %v1076, %v1077
        %v1079 = vsel %vm993, %v1056, 0.0
        %v1080 = vadd.f32 %v1078, %v1079
        %v1081 = vsel %vm993, %v1057, 0.0
        %v1082 = vadd.f32 %v1080, %v1081
        %v1083 = vsel %vm993, %v1058, 0.0
        %v1084 = vadd.f32 %v1082, %v1083
        %v1085 = vsel %vm993, %v1059, 0.0
        %v1086 = vadd.f32 %v1084, %v1085
        %v1087 = vsel %vm993, %v1060, 0.0
        %v1088 = vadd.f32 %v1086, %v1087
        %v1089 = vsel %vm993, %v1061, 0.0
        %v1090 = vadd.f32 %v1088, %v1089
        %v1091 = vsel %vm993, %v1062, 0.0
        %v1092 = vadd.f32 %v1090, %v1091
        %v1093 = vsel %vm993, %v1063, 0.0
        %v1094 = vadd.f32 %v1092, %v1093
        %v1095 = vrot.slane %v1094, 4
        %v1096 = vadd.f32 %v1094, %v1095
        %v1097 = vrot.slane %v1096, 2
        %v1098 = vadd.f32 %v1096, %v1097
        %v1099 = vrot.slane %v1098, 1
        %v1100 = vadd.f32 %v1098, %v1099
        %v1101 = vadd.f32 %v1100, 0.0
        %1102 = vst.msk [vmem:[#allocation2] sm:$0xff] %vm219, 0.0
        %1103 = vst.msk [vmem:[#allocation2 + $0x8] sm:$0xff] %vm219, 0.0
        %1104 = vst.msk [vmem:[#allocation2 + $0x10] sm:$0xff] %vm219, 0.0
        %1105 = vst.msk [vmem:[#allocation2 + $0x18] sm:$0xff] %vm219, 0.0
        %1106 = vst.msk [vmem:[#allocation2 + $0x20] sm:$0xff] %vm219, 0.0
        %1107 = vst.msk [vmem:[#allocation2 + $0x28] sm:$0xff] %vm219, 0.0
        %1108 = vst.msk [vmem:[#allocation2 + $0x30] sm:$0xff] %vm219, 0.0
        %1109 = vst.msk [vmem:[#allocation2 + $0x38] sm:$0xff] %vm219, 0.0
        %1110 = vst.msk [vmem:[#allocation2 + $0x40] sm:$0xff] %vm219, 0.0
        %1111 = vst.msk [vmem:[#allocation2 + $0x48] sm:$0xff] %vm219, 0.0
        %1112 = vst.msk [vmem:[#allocation2 + $0x50] sm:$0xff] %vm219, 0.0
        %1113 = vst.msk [vmem:[#allocation2 + $0x58] sm:$0xff] %vm219, 0.0
        %1114 = vst.msk [vmem:[#allocation2 + $0x60] sm:$0xff] %vm219, 0.0
        %1115 = vst.msk [vmem:[#allocation2 + $0x68] sm:$0xff] %vm219, 0.0
        %1116 = vst.msk [vmem:[#allocation2 + $0x70] sm:$0xff] %vm219, 0.0
        %1117 = vst.msk [vmem:[#allocation2 + $0x78] sm:$0xff] %vm219, 0.0
        %1118 = vst.msk [vmem:[#allocation2 + $0x1] sm:$0xff] %vm237, %v196
        %1119 = vst.msk [vmem:[#allocation2 + $0x9] sm:$0x7f] %vm239, %v197
        %1120 = vst.msk [vmem:[#allocation2 + $0x11] sm:$0xff] %vm237, %v198
        %1121 = vst.msk [vmem:[#allocation2 + $0x19] sm:$0x7f] %vm239, %v199
        %1122 = vst.msk [vmem:[#allocation2 + $0x21] sm:$0xff] %vm237, %v200
        %1123 = vst.msk [vmem:[#allocation2 + $0x29] sm:$0x7f] %vm239, %v201
        %1124 = vst.msk [vmem:[#allocation2 + $0x31] sm:$0xff] %vm237, %v202
        %1125 = vst.msk [vmem:[#allocation2 + $0x39] sm:$0x7f] %vm239, %v203
        %1126 = vst.msk [vmem:[#allocation2 + $0x41] sm:$0xff] %vm237, %v204
        %1127 = vst.msk [vmem:[#allocation2 + $0x49] sm:$0x7f] %vm239, %v205
        %1128 = vst.msk [vmem:[#allocation2 + $0x51] sm:$0xff] %vm237, %v206
        %1129 = vst.msk [vmem:[#allocation2 + $0x59] sm:$0x7f] %vm239, %v207
        %1130 = vst.msk [vmem:[#allocation2 + $0x61] sm:$0xff] %vm237, %v208
        %1131 = vst.msk [vmem:[#allocation2 + $0x69] sm:$0x7f] %vm239, %v209
        %1132 = vst.msk [vmem:[#allocation2 + $0x71] sm:$0xff] %vm237, %v210
        %1133 = vst.msk [vmem:[#allocation2 + $0x79] sm:$0x7f] %vm239, %v211
        %1146 = vrot.lane.b32.xlu0 %v196, 4
        %v1147 = vpop.permute.xlu0 %1146
        %1148 = vrot.lane.b32.xlu0 %v197, 4
        %v1149 = vpop.permute.xlu0 %1148
        %1150 = vrot.lane.b32.xlu0 %v198, 4
        %v1151 = vpop.permute.xlu0 %1150
        %1152 = vrot.lane.b32.xlu0 %v199, 4
        %v1153 = vpop.permute.xlu0 %1152
        %1154 = vrot.lane.b32.xlu0 %v200, 4
        %v1155 = vpop.permute.xlu0 %1154
        %1156 = vrot.lane.b32.xlu0 %v201, 4
        %v1157 = vpop.permute.xlu0 %1156
        %1158 = vrot.lane.b32.xlu0 %v202, 4
        %v1159 = vpop.permute.xlu0 %1158
        %1160 = vrot.lane.b32.xlu0 %v203, 4
        %v1161 = vpop.permute.xlu0 %1160
        %1162 = vrot.lane.b32.xlu0 %v204, 4
        %v1163 = vpop.permute.xlu0 %1162
        %1164 = vrot.lane.b32.xlu0 %v205, 4
        %v1165 = vpop.permute.xlu0 %1164
        %1166 = vrot.lane.b32.xlu0 %v206, 4
        %v1167 = vpop.permute.xlu0 %1166
        %1168 = vrot.lane.b32.xlu0 %v207, 4
        %v1169 = vpop.permute.xlu0 %1168
        %1170 = vrot.lane.b32.xlu0 %v208, 4
        %v1171 = vpop.permute.xlu0 %1170
        %1172 = vrot.lane.b32.xlu0 %v209, 4
        %v1173 = vpop.permute.xlu0 %1172
        %1174 = vrot.lane.b32.xlu0 %v210, 4
        %v1175 = vpop.permute.xlu0 %1174
        %1176 = vrot.lane.b32.xlu0 %v211, 4
        %v1177 = vpop.permute.xlu0 %1176
        %1194 = vst.msk [vmem:[#allocation2] sm:$0xff] %vm309, %v1147
        %1195 = vst.msk [vmem:[#allocation2 + $0x8] sm:$0xff] %vm309, %v1149
        %1196 = vst.msk [vmem:[#allocation2 + $0x10] sm:$0xff] %vm309, %v1151
        %1197 = vst.msk [vmem:[#allocation2 + $0x18] sm:$0xff] %vm309, %v1153
        %1198 = vst.msk [vmem:[#allocation2 + $0x20] sm:$0xff] %vm309, %v1155
        %1199 = vst.msk [vmem:[#allocation2 + $0x28] sm:$0xff] %vm309, %v1157
        %1200 = vst.msk [vmem:[#allocation2 + $0x30] sm:$0xff] %vm309, %v1159
        %1201 = vst.msk [vmem:[#allocation2 + $0x38] sm:$0xff] %vm309, %v1161
        %1202 = vst.msk [vmem:[#allocation2 + $0x40] sm:$0xff] %vm309, %v1163
        %1203 = vst.msk [vmem:[#allocation2 + $0x48] sm:$0xff] %vm309, %v1165
        %1204 = vst.msk [vmem:[#allocation2 + $0x50] sm:$0xff] %vm309, %v1167
        %1205 = vst.msk [vmem:[#allocation2 + $0x58] sm:$0xff] %vm309, %v1169
        %1206 = vst.msk [vmem:[#allocation2 + $0x60] sm:$0xff] %vm309, %v1171
        %1207 = vst.msk [vmem:[#allocation2 + $0x68] sm:$0xff] %vm309, %v1173
        %1208 = vst.msk [vmem:[#allocation2 + $0x70] sm:$0xff] %vm309, %v1175
        %1209 = vst.msk [vmem:[#allocation2 + $0x78] sm:$0xff] %vm309, %v1177
        %1210 = vrot.lane.b32.xlu0 %v196, 8
        %v1211 = vpop.permute.xlu0 %1210
        %1212 = vrot.lane.b32.xlu0 %v197, 8
        %v1213 = vpop.permute.xlu0 %1212
        %1214 = vrot.lane.b32.xlu0 %v198, 8
        %v1215 = vpop.permute.xlu0 %1214
        %1216 = vrot.lane.b32.xlu0 %v199, 8
        %v1217 = vpop.permute.xlu0 %1216
        %1218 = vrot.lane.b32.xlu0 %v200, 8
        %v1219 = vpop.permute.xlu0 %1218
        %1220 = vrot.lane.b32.xlu0 %v201, 8
        %v1221 = vpop.permute.xlu0 %1220
        %1222 = vrot.lane.b32.xlu0 %v202, 8
        %v1223 = vpop.permute.xlu0 %1222
        %1224 = vrot.lane.b32.xlu0 %v203, 8
        %v1225 = vpop.permute.xlu0 %1224
        %1226 = vrot.lane.b32.xlu0 %v204, 8
        %v1227 = vpop.permute.xlu0 %1226
        %1228 = vrot.lane.b32.xlu0 %v205, 8
        %v1229 = vpop.permute.xlu0 %1228
        %1230 = vrot.lane.b32.xlu0 %v206, 8
        %v1231 = vpop.permute.xlu0 %1230
        %1232 = vrot.lane.b32.xlu0 %v207, 8
        %v1233 = vpop.permute.xlu0 %1232
        %1234 = vrot.lane.b32.xlu0 %v208, 8
        %v1235 = vpop.permute.xlu0 %1234
        %1236 = vrot.lane.b32.xlu0 %v209, 8
        %v1237 = vpop.permute.xlu0 %1236
        %1238 = vrot.lane.b32.xlu0 %v210, 8
        %v1239 = vpop.permute.xlu0 %1238
        %1240 = vrot.lane.b32.xlu0 %v211, 8
        %v1241 = vpop.permute.xlu0 %1240
        %1258 = vst.msk [vmem:[#allocation2 - $0x1] sm:$0xfe] %vm366, %v1211
        %1259 = vst.msk [vmem:[#allocation2 + $0x7] sm:$0xff] %vm368, %v1213
        %1260 = vst.msk [vmem:[#allocation2 + $0xf] sm:$0xfe] %vm366, %v1215
        %1261 = vst.msk [vmem:[#allocation2 + $0x17] sm:$0xff] %vm368, %v1217
        %1262 = vst.msk [vmem:[#allocation2 + $0x1f] sm:$0xfe] %vm366, %v1219
        %1263 = vst.msk [vmem:[#allocation2 + $0x27] sm:$0xff] %vm368, %v1221
        %1264 = vst.msk [vmem:[#allocation2 + $0x2f] sm:$0xfe] %vm366, %v1223
        %1265 = vst.msk [vmem:[#allocation2 + $0x37] sm:$0xff] %vm368, %v1225
        %1266 = vst.msk [vmem:[#allocation2 + $0x3f] sm:$0xfe] %vm366, %v1227
        %1267 = vst.msk [vmem:[#allocation2 + $0x47] sm:$0xff] %vm368, %v1229
        %1268 = vst.msk [vmem:[#allocation2 + $0x4f] sm:$0xfe] %vm366, %v1231
        %1269 = vst.msk [vmem:[#allocation2 + $0x57] sm:$0xff] %vm368, %v1233
        %1270 = vst.msk [vmem:[#allocation2 + $0x5f] sm:$0xfe] %vm366, %v1235
        %1271 = vst.msk [vmem:[#allocation2 + $0x67] sm:$0xff] %vm368, %v1237
        %1272 = vst.msk [vmem:[#allocation2 + $0x6f] sm:$0xfe] %vm366, %v1239
        %1273 = vst.msk [vmem:[#allocation2 + $0x77] sm:$0xff] %vm368, %v1241
        %1276 = vrot.lane.b32.xlu0 %v198, 12
        %v1277 = vpop.permute.xlu0 %1276
        %1278 = vrot.lane.b32.xlu0 %v199, 12
        %v1279 = vpop.permute.xlu0 %1278
        %1280 = vrot.lane.b32.xlu0 %v200, 12
        %v1281 = vpop.permute.xlu0 %1280
        %1282 = vrot.lane.b32.xlu0 %v201, 12
        %v1283 = vpop.permute.xlu0 %1282
        %1284 = vrot.lane.b32.xlu0 %v202, 12
        %v1285 = vpop.permute.xlu0 %1284
        %1286 = vrot.lane.b32.xlu0 %v203, 12
        %v1287 = vpop.permute.xlu0 %1286
        %1288 = vrot.lane.b32.xlu0 %v204, 12
        %v1289 = vpop.permute.xlu0 %1288
        %1290 = vrot.lane.b32.xlu0 %v205, 12
        %v1291 = vpop.permute.xlu0 %1290
        %1292 = vrot.lane.b32.xlu0 %v206, 12
        %v1293 = vpop.permute.xlu0 %1292
        %1294 = vrot.lane.b32.xlu0 %v207, 12
        %v1295 = vpop.permute.xlu0 %1294
        %1296 = vrot.lane.b32.xlu0 %v208, 12
        %v1297 = vpop.permute.xlu0 %1296
        %1298 = vrot.lane.b32.xlu0 %v209, 12
        %v1299 = vpop.permute.xlu0 %1298
        %1300 = vrot.lane.b32.xlu0 %v210, 12
        %v1301 = vpop.permute.xlu0 %1300
        %1302 = vrot.lane.b32.xlu0 %v211, 12
        %v1303 = vpop.permute.xlu0 %1302
        %1304 = vrot.lane.b32.xlu0 %v212, 12
        %v1305 = vpop.permute.xlu0 %1304
        %1306 = vrot.lane.b32.xlu0 %v213, 12
        %v1307 = vpop.permute.xlu0 %1306
        %1324 = vst.msk [vmem:[#allocation2 + $0x1] sm:$0xff] %vm432, %v1277
        %1325 = vst.msk [vmem:[#allocation2 + $0x9] sm:$0x7f] %vm434, %v1279
        %1326 = vst.msk [vmem:[#allocation2 + $0x11] sm:$0xff] %vm432, %v1281
        %1327 = vst.msk [vmem:[#allocation2 + $0x19] sm:$0x7f] %vm434, %v1283
        %1328 = vst.msk [vmem:[#allocation2 + $0x21] sm:$0xff] %vm432, %v1285
        %1329 = vst.msk [vmem:[#allocation2 + $0x29] sm:$0x7f] %vm434, %v1287
        %1330 = vst.msk [vmem:[#allocation2 + $0x31] sm:$0xff] %vm432, %v1289
        %1331 = vst.msk [vmem:[#allocation2 + $0x39] sm:$0x7f] %vm434, %v1291
        %1332 = vst.msk [vmem:[#allocation2 + $0x41] sm:$0xff] %vm432, %v1293
        %1333 = vst.msk [vmem:[#allocation2 + $0x49] sm:$0x7f] %vm434, %v1295
        %1334 = vst.msk [vmem:[#allocation2 + $0x51] sm:$0xff] %vm432, %v1297
        %1335 = vst.msk [vmem:[#allocation2 + $0x59] sm:$0x7f] %vm434, %v1299
        %1336 = vst.msk [vmem:[#allocation2 + $0x61] sm:$0xff] %vm432, %v1301
        %1337 = vst.msk [vmem:[#allocation2 + $0x69] sm:$0x7f] %vm434, %v1303
        %1338 = vst.msk [vmem:[#allocation2 + $0x71] sm:$0xff] %vm432, %v1305
        %1339 = vst.msk [vmem:[#allocation2 + $0x79] sm:$0x7f] %vm434, %v1307
        %1340 = vrot.lane.b32.xlu0 %v198, 16
        %v1341 = vpop.permute.xlu0 %1340
        %1342 = vrot.lane.b32.xlu0 %v199, 16
        %v1343 = vpop.permute.xlu0 %1342
        %1344 = vrot.lane.b32.xlu0 %v200, 16
        %v1345 = vpop.permute.xlu0 %1344
        %1346 = vrot.lane.b32.xlu0 %v201, 16
        %v1347 = vpop.permute.xlu0 %1346
        %1348 = vrot.lane.b32.xlu0 %v202, 16
        %v1349 = vpop.permute.xlu0 %1348
        %1350 = vrot.lane.b32.xlu0 %v203, 16
        %v1351 = vpop.permute.xlu0 %1350
        %1352 = vrot.lane.b32.xlu0 %v204, 16
        %v1353 = vpop.permute.xlu0 %1352
        %1354 = vrot.lane.b32.xlu0 %v205, 16
        %v1355 = vpop.permute.xlu0 %1354
        %1356 = vrot.lane.b32.xlu0 %v206, 16
        %v1357 = vpop.permute.xlu0 %1356
        %1358 = vrot.lane.b32.xlu0 %v207, 16
        %v1359 = vpop.permute.xlu0 %1358
        %1360 = vrot.lane.b32.xlu0 %v208, 16
        %v1361 = vpop.permute.xlu0 %1360
        %1362 = vrot.lane.b32.xlu0 %v209, 16
        %v1363 = vpop.permute.xlu0 %1362
        %1364 = vrot.lane.b32.xlu0 %v210, 16
        %v1365 = vpop.permute.xlu0 %1364
        %1366 = vrot.lane.b32.xlu0 %v211, 16
        %v1367 = vpop.permute.xlu0 %1366
        %1368 = vrot.lane.b32.xlu0 %v212, 16
        %v1369 = vpop.permute.xlu0 %1368
        %1370 = vrot.lane.b32.xlu0 %v213, 16
        %v1371 = vpop.permute.xlu0 %1370
        %1388 = vst.msk [vmem:[#allocation2] sm:$0xff] %vm498, %v1341
        %1389 = vst.msk [vmem:[#allocation2 + $0x8] sm:$0xff] %vm498, %v1343
        %1390 = vst.msk [vmem:[#allocation2 + $0x10] sm:$0xff] %vm498, %v1345
        %1391 = vst.msk [vmem:[#allocation2 + $0x18] sm:$0xff] %vm498, %v1347
        %1392 = vst.msk [vmem:[#allocation2 + $0x20] sm:$0xff] %vm498, %v1349
        %1393 = vst.msk [vmem:[#allocation2 + $0x28] sm:$0xff] %vm498, %v1351
        %1394 = vst.msk [vmem:[#allocation2 + $0x30] sm:$0xff] %vm498, %v1353
        %1395 = vst.msk [vmem:[#allocation2 + $0x38] sm:$0xff] %vm498, %v1355
        %1396 = vst.msk [vmem:[#allocation2 + $0x40] sm:$0xff] %vm498, %v1357
        %1397 = vst.msk [vmem:[#allocation2 + $0x48] sm:$0xff] %vm498, %v1359
        %1398 = vst.msk [vmem:[#allocation2 + $0x50] sm:$0xff] %vm498, %v1361
        %1399 = vst.msk [vmem:[#allocation2 + $0x58] sm:$0xff] %vm498, %v1363
        %1400 = vst.msk [vmem:[#allocation2 + $0x60] sm:$0xff] %vm498, %v1365
        %1401 = vst.msk [vmem:[#allocation2 + $0x68] sm:$0xff] %vm498, %v1367
        %1402 = vst.msk [vmem:[#allocation2 + $0x70] sm:$0xff] %vm498, %v1369
        %1403 = vst.msk [vmem:[#allocation2 + $0x78] sm:$0xff] %vm498, %v1371
        %1404 = vrot.lane.b32.xlu0 %v198, 20
        %v1405 = vpop.permute.xlu0 %1404
        %1406 = vrot.lane.b32.xlu0 %v199, 20
        %v1407 = vpop.permute.xlu0 %1406
        %1408 = vrot.lane.b32.xlu0 %v200, 20
        %v1409 = vpop.permute.xlu0 %1408
        %1410 = vrot.lane.b32.xlu0 %v201, 20
        %v1411 = vpop.permute.xlu0 %1410
        %1412 = vrot.lane.b32.xlu0 %v202, 20
        %v1413 = vpop.permute.xlu0 %1412
        %1414 = vrot.lane.b32.xlu0 %v203, 20
        %v1415 = vpop.permute.xlu0 %1414
        %1416 = vrot.lane.b32.xlu0 %v204, 20
        %v1417 = vpop.permute.xlu0 %1416
        %1418 = vrot.lane.b32.xlu0 %v205, 20
        %v1419 = vpop.permute.xlu0 %1418
        %1420 = vrot.lane.b32.xlu0 %v206, 20
        %v1421 = vpop.permute.xlu0 %1420
        %1422 = vrot.lane.b32.xlu0 %v207, 20
        %v1423 = vpop.permute.xlu0 %1422
        %1424 = vrot.lane.b32.xlu0 %v208, 20
        %v1425 = vpop.permute.xlu0 %1424
        %1426 = vrot.lane.b32.xlu0 %v209, 20
        %v1427 = vpop.permute.xlu0 %1426
        %1428 = vrot.lane.b32.xlu0 %v210, 20
        %v1429 = vpop.permute.xlu0 %1428
        %1430 = vrot.lane.b32.xlu0 %v211, 20
        %v1431 = vpop.permute.xlu0 %1430
        %1432 = vrot.lane.b32.xlu0 %v212, 20
        %v1433 = vpop.permute.xlu0 %1432
        %1434 = vrot.lane.b32.xlu0 %v213, 20
        %v1435 = vpop.permute.xlu0 %1434
        %1452 = vst.msk [vmem:[#allocation2 - $0x1] sm:$0xfe] %vm563, %v1405
        %1453 = vst.msk [vmem:[#allocation2 + $0x7] sm:$0xff] %vm565, %v1407
        %1454 = vst.msk [vmem:[#allocation2 + $0xf] sm:$0xfe] %vm563, %v1409
        %1455 = vst.msk [vmem:[#allocation2 + $0x17] sm:$0xff] %vm565, %v1411
        %1456 = vst.msk [vmem:[#allocation2 + $0x1f] sm:$0xfe] %vm563, %v1413
        %1457 = vst.msk [vmem:[#allocation2 + $0x27] sm:$0xff] %vm565, %v1415
        %1458 = vst.msk [vmem:[#allocation2 + $0x2f] sm:$0xfe] %vm563, %v1417
        %1459 = vst.msk [vmem:[#allocation2 + $0x37] sm:$0xff] %vm565, %v1419
        %1460 = vst.msk [vmem:[#allocation2 + $0x3f] sm:$0xfe] %vm563, %v1421
        %1461 = vst.msk [vmem:[#allocation2 + $0x47] sm:$0xff] %vm565, %v1423
        %1462 = vst.msk [vmem:[#allocation2 + $0x4f] sm:$0xfe] %vm563, %v1425
        %1463 = vst.msk [vmem:[#allocation2 + $0x57] sm:$0xff] %vm565, %v1427
        %1464 = vst.msk [vmem:[#allocation2 + $0x5f] sm:$0xfe] %vm563, %v1429
        %1465 = vst.msk [vmem:[#allocation2 + $0x67] sm:$0xff] %vm565, %v1431
        %1466 = vst.msk [vmem:[#allocation2 + $0x6f] sm:$0xfe] %vm563, %v1433
        %1467 = vst.msk [vmem:[#allocation2 + $0x77] sm:$0xff] %vm565, %v1435
        %1468 = vrot.lane.b32.xlu0 %v200, 24
        %v1469 = vpop.permute.xlu0 %1468
        %1470 = vrot.lane.b32.xlu0 %v201, 24
        %v1471 = vpop.permute.xlu0 %1470
        %1472 = vrot.lane.b32.xlu0 %v202, 24
        %v1473 = vpop.permute.xlu0 %1472
        %1474 = vrot.lane.b32.xlu0 %v203, 24
        %v1475 = vpop.permute.xlu0 %1474
        %1476 = vrot.lane.b32.xlu0 %v204, 24
        %v1477 = vpop.permute.xlu0 %1476
        %1478 = vrot.lane.b32.xlu0 %v205, 24
        %v1479 = vpop.permute.xlu0 %1478
        %1480 = vrot.lane.b32.xlu0 %v206, 24
        %v1481 = vpop.permute.xlu0 %1480
        %1482 = vrot.lane.b32.xlu0 %v207, 24
        %v1483 = vpop.permute.xlu0 %1482
        %1484 = vrot.lane.b32.xlu0 %v208, 24
        %v1485 = vpop.permute.xlu0 %1484
        %1486 = vrot.lane.b32.xlu0 %v209, 24
        %v1487 = vpop.permute.xlu0 %1486
        %1488 = vrot.lane.b32.xlu0 %v210, 24
        %v1489 = vpop.permute.xlu0 %1488
        %1490 = vrot.lane.b32.xlu0 %v211, 24
        %v1491 = vpop.permute.xlu0 %1490
        %1492 = vrot.lane.b32.xlu0 %v212, 24
        %v1493 = vpop.permute.xlu0 %1492
        %1494 = vrot.lane.b32.xlu0 %v213, 24
        %v1495 = vpop.permute.xlu0 %1494
        %1510 = vst.msk [vmem:[#allocation2 + $0x1] sm:$0xff] %vm631, %v1469
        %1511 = vst.msk [vmem:[#allocation2 + $0x9] sm:$0x7f] %vm633, %v1471
        %1512 = vst.msk [vmem:[#allocation2 + $0x11] sm:$0xff] %vm631, %v1473
        %1513 = vst.msk [vmem:[#allocation2 + $0x19] sm:$0x7f] %vm633, %v1475
        %1514 = vst.msk [vmem:[#allocation2 + $0x21] sm:$0xff] %vm631, %v1477
        %1515 = vst.msk [vmem:[#allocation2 + $0x29] sm:$0x7f] %vm633, %v1479
        %1516 = vst.msk [vmem:[#allocation2 + $0x31] sm:$0xff] %vm631, %v1481
        %1517 = vst.msk [vmem:[#allocation2 + $0x39] sm:$0x7f] %vm633, %v1483
        %1518 = vst.msk [vmem:[#allocation2 + $0x41] sm:$0xff] %vm631, %v1485
        %1519 = vst.msk [vmem:[#allocation2 + $0x49] sm:$0x7f] %vm633, %v1487
        %1520 = vst.msk [vmem:[#allocation2 + $0x51] sm:$0xff] %vm631, %v1489
        %1521 = vst.msk [vmem:[#allocation2 + $0x59] sm:$0x7f] %vm633, %v1491
        %1522 = vst.msk [vmem:[#allocation2 + $0x61] sm:$0xff] %vm631, %v1493
        %1523 = vst.msk [vmem:[#allocation2 + $0x69] sm:$0x7f] %vm633, %v1495
        %1524 = vrot.lane.b32.xlu0 %v200, 28
        %v1525 = vpop.permute.xlu0 %1524
        %1526 = vrot.lane.b32.xlu0 %v201, 28
        %v1527 = vpop.permute.xlu0 %1526
        %1528 = vrot.lane.b32.xlu0 %v202, 28
        %v1529 = vpop.permute.xlu0 %1528
        %1530 = vrot.lane.b32.xlu0 %v203, 28
        %v1531 = vpop.permute.xlu0 %1530
        %1532 = vrot.lane.b32.xlu0 %v204, 28
        %v1533 = vpop.permute.xlu0 %1532
        %1534 = vrot.lane.b32.xlu0 %v205, 28
        %v1535 = vpop.permute.xlu0 %1534
        %1536 = vrot.lane.b32.xlu0 %v206, 28
        %v1537 = vpop.permute.xlu0 %1536
        %1538 = vrot.lane.b32.xlu0 %v207, 28
        %v1539 = vpop.permute.xlu0 %1538
        %1540 = vrot.lane.b32.xlu0 %v208, 28
        %v1541 = vpop.permute.xlu0 %1540
        %1542 = vrot.lane.b32.xlu0 %v209, 28
        %v1543 = vpop.permute.xlu0 %1542
        %1544 = vrot.lane.b32.xlu0 %v210, 28
        %v1545 = vpop.permute.xlu0 %1544
        %1546 = vrot.lane.b32.xlu0 %v211, 28
        %v1547 = vpop.permute.xlu0 %1546
        %1548 = vrot.lane.b32.xlu0 %v212, 28
        %v1549 = vpop.permute.xlu0 %1548
        %1550 = vrot.lane.b32.xlu0 %v213, 28
        %v1551 = vpop.permute.xlu0 %1550
        %1566 = vst.msk [vmem:[#allocation2] sm:$0xff] %vm697, %v1525
        %1567 = vst.msk [vmem:[#allocation2 + $0x8] sm:$0xff] %vm697, %v1527
        %1568 = vst.msk [vmem:[#allocation2 + $0x10] sm:$0xff] %vm697, %v1529
        %1569 = vst.msk [vmem:[#allocation2 + $0x18] sm:$0xff] %vm697, %v1531
        %1570 = vst.msk [vmem:[#allocation2 + $0x20] sm:$0xff] %vm697, %v1533
        %1571 = vst.msk [vmem:[#allocation2 + $0x28] sm:$0xff] %vm697, %v1535
        %1572 = vst.msk [vmem:[#allocation2 + $0x30] sm:$0xff] %vm697, %v1537
        %1573 = vst.msk [vmem:[#allocation2 + $0x38] sm:$0xff] %vm697, %v1539
        %1574 = vst.msk [vmem:[#allocation2 + $0x40] sm:$0xff] %vm697, %v1541
        %1575 = vst.msk [vmem:[#allocation2 + $0x48] sm:$0xff] %vm697, %v1543
        %1576 = vst.msk [vmem:[#allocation2 + $0x50] sm:$0xff] %vm697, %v1545
        %1577 = vst.msk [vmem:[#allocation2 + $0x58] sm:$0xff] %vm697, %v1547
        %1578 = vst.msk [vmem:[#allocation2 + $0x60] sm:$0xff] %vm697, %v1549
        %1579 = vst.msk [vmem:[#allocation2 + $0x68] sm:$0xff] %vm697, %v1551
        %1580 = vrot.lane.b32.xlu0 %v200, 32
        %v1581 = vpop.permute.xlu0 %1580
        %1582 = vrot.lane.b32.xlu0 %v201, 32
        %v1583 = vpop.permute.xlu0 %1582
        %1584 = vrot.lane.b32.xlu0 %v202, 32
        %v1585 = vpop.permute.xlu0 %1584
        %1586 = vrot.lane.b32.xlu0 %v203, 32
        %v1587 = vpop.permute.xlu0 %1586
        %1588 = vrot.lane.b32.xlu0 %v204, 32
        %v1589 = vpop.permute.xlu0 %1588
        %1590 = vrot.lane.b32.xlu0 %v205, 32
        %v1591 = vpop.permute.xlu0 %1590
        %1592 = vrot.lane.b32.xlu0 %v206, 32
        %v1593 = vpop.permute.xlu0 %1592
        %1594 = vrot.lane.b32.xlu0 %v207, 32
        %v1595 = vpop.permute.xlu0 %1594
        %1596 = vrot.lane.b32.xlu0 %v208, 32
        %v1597 = vpop.permute.xlu0 %1596
        %1598 = vrot.lane.b32.xlu0 %v209, 32
        %v1599 = vpop.permute.xlu0 %1598
        %1600 = vrot.lane.b32.xlu0 %v210, 32
        %v1601 = vpop.permute.xlu0 %1600
        %1602 = vrot.lane.b32.xlu0 %v211, 32
        %v1603 = vpop.permute.xlu0 %1602
        %1604 = vrot.lane.b32.xlu0 %v212, 32
        %v1605 = vpop.permute.xlu0 %1604
        %1606 = vrot.lane.b32.xlu0 %v213, 32
        %v1607 = vpop.permute.xlu0 %1606
        %1622 = vst.msk [vmem:[#allocation2 - $0x1] sm:$0xfe] %vm762, %v1581
        %1623 = vst.msk [vmem:[#allocation2 + $0x7] sm:$0xff] %vm764, %v1583
        %1624 = vst.msk [vmem:[#allocation2 + $0xf] sm:$0xfe] %vm762, %v1585
        %1625 = vst.msk [vmem:[#allocation2 + $0x17] sm:$0xff] %vm764, %v1587
        %1626 = vst.msk [vmem:[#allocation2 + $0x1f] sm:$0xfe] %vm762, %v1589
        %1627 = vst.msk [vmem:[#allocation2 + $0x27] sm:$0xff] %vm764, %v1591
        %1628 = vst.msk [vmem:[#allocation2 + $0x2f] sm:$0xfe] %vm762, %v1593
        %1629 = vst.msk [vmem:[#allocation2 + $0x37] sm:$0xff] %vm764, %v1595
        %1630 = vst.msk [vmem:[#allocation2 + $0x3f] sm:$0xfe] %vm762, %v1597
        %1631 = vst.msk [vmem:[#allocation2 + $0x47] sm:$0xff] %vm764, %v1599
        %1632 = vst.msk [vmem:[#allocation2 + $0x4f] sm:$0xfe] %vm762, %v1601
        %1633 = vst.msk [vmem:[#allocation2 + $0x57] sm:$0xff] %vm764, %v1603
        %1634 = vst.msk [vmem:[#allocation2 + $0x5f] sm:$0xfe] %vm762, %v1605
        %1635 = vst.msk [vmem:[#allocation2 + $0x67] sm:$0xff] %vm764, %v1607
        %v1636 = vld [vmem:[#allocation2] sm:$0xff]
        %v1637 = vld [vmem:[#allocation2 + $0x8] sm:$0xff]
        %v1638 = vld [vmem:[#allocation2 + $0x10] sm:$0xff]
        %v1639 = vld [vmem:[#allocation2 + $0x18] sm:$0xff]
        %v1640 = vld [vmem:[#allocation2 + $0x20] sm:$0xff]
        %v1641 = vld [vmem:[#allocation2 + $0x28] sm:$0xff]
        %v1642 = vld [vmem:[#allocation2 + $0x30] sm:$0xff]
        %v1643 = vld [vmem:[#allocation2 + $0x38] sm:$0xff]
        %v1644 = vld [vmem:[#allocation2 + $0x40] sm:$0xff]
        %v1645 = vld [vmem:[#allocation2 + $0x48] sm:$0xff]
        %v1646 = vld [vmem:[#allocation2 + $0x50] sm:$0xff]
        %v1647 = vld [vmem:[#allocation2 + $0x58] sm:$0xff]
        %v1648 = vld [vmem:[#allocation2 + $0x60] sm:$0xff]
        %v1649 = vld [vmem:[#allocation2 + $0x68] sm:$0xff]
        %v1650 = vld [vmem:[#allocation2 + $0x70] sm:$0xff]
        %v1651 = vld [vmem:[#allocation2 + $0x78] sm:$0xff]
        %v1653 = vsel %vm219, %v1636, 0
        %v1656 = vsel %vm219, %v1637, 0
        %v1659 = vsel %vm219, %v1638, 0
        %v1662 = vsel %vm219, %v1639, 0
        %v1665 = vsel %vm219, %v1640, 0
        %v1668 = vsel %vm219, %v1641, 0
        %v1671 = vsel %vm219, %v1642, 0
        %v1674 = vsel %vm219, %v1643, 0
        %v1677 = vsel %vm219, %v1644, 0
        %v1680 = vsel %vm219, %v1645, 0
        %v1683 = vsel %vm219, %v1646, 0
        %v1686 = vsel %vm219, %v1647, 0
        %v1689 = vsel %vm219, %v1648, 0
        %v1692 = vsel %vm219, %v1649, 0
        %v1695 = vsel %vm219, %v1650, 0
        %v1698 = vsel %vm219, %v1651, 0
        %1700 = vmatprep.subr.mxu0 0.0
        %1701 = vmatpush1.msra.mxu0 %v214
        %1702 = vmatprep.subr.mxu0 0.0
        %1703 = vmatpush1.msra.mxu0 %v215
        %1704 = vmatprep.subr.mxu0 0.0
        %1705 = vmatpush1.msra.mxu0 %v216
        %1706 = vmatprep.subr.mxu0 0.0
        %1707 = vmatpush1.msra.mxu0 %v217
        %1708 = vmatprep.subr.mxu0 0.0
        %1709 = vmatpush1.msra.mxu0 %v846
        %1710 = vmatprep.subr.mxu0 0.0
        %1711 = vmatpush1.msra.mxu0 0.0
        %1712 = vmatprep.subr.mxu0 0.0
        %1713 = vmatpush1.msra.mxu0 0.0
        %1714 = vmatprep.subr.mxu0 0.0
        %1715 = vmatpush1.msra.mxu0 0.0
        %1716 = vmatprep.subr.mxu0 0.0
        %1717 = vmatpush1.msra.mxu0 0.0
        %1718 = vmatprep.subr.mxu0 0.0
        %1719 = vmatpush1.msra.mxu0 0.0
        %1720 = vmatprep.subr.mxu0 0.0
        %1721 = vmatpush1.msra.mxu0 0.0
        %1722 = vmatprep.subr.mxu0 0.0
        %1723 = vmatpush1.msra.mxu0 0.0
        %1724 = vmatprep.subr.mxu0 0.0
        %1725 = vmatpush1.msra.mxu0 0.0
        %1726 = vmatprep.subr.mxu0 0.0
        %1727 = vmatpush1.msra.mxu0 0.0
        %1728 = vmatprep.subr.mxu0 0.0
        %1729 = vmatpush1.msra.mxu0 0.0
        %1730 = vmatprep.subr.mxu0 0.0
        %1731 = vmatpush1.msra.mxu0 0.0
        %1732 = vmatprep.subr.mxu0 0.0
        %1733 = vmatpush1.msra.mxu0 0.0
        %1734 = vmatprep.subr.mxu0 0.0
        %1735 = vmatpush1.msra.mxu0 0.0
        %1736 = vmatprep.subr.mxu0 0.0
        %1737 = vmatpush1.msra.mxu0 0.0
        %1738 = vmatprep.subr.mxu0 0.0
        %1739 = vmatpush1.msra.mxu0 0.0
        %1740 = vmatprep.subr.mxu0 0.0
        %1741 = vmatpush1.msra.mxu0 0.0
        %1742 = vmatprep.subr.mxu0 0.0
        %1743 = vmatpush1.msra.mxu0 0.0
        %1744 = vmatprep.subr.mxu0 0.0
        %1745 = vmatpush1.msra.mxu0 0.0
        %1746 = vmatprep.subr.mxu0 0.0
        %1747 = vmatpush1.msra.mxu0 0.0
        %1748 = vmatprep.subr.mxu0 0.0
        %1749 = vmatpush1.msra.mxu0 0.0
        %1750 = vmatprep.subr.mxu0 0.0
        %1751 = vmatpush1.msra.mxu0 0.0
        %1752 = vmatprep.subr.mxu0 0.0
        %1753 = vmatpush1.msra.mxu0 0.0
        %1754 = vmatprep.subr.mxu0 0.0
        %1755 = vmatpush1.msra.mxu0 0.0
        %1756 = vmatprep.subr.mxu0 0.0
        %1757 = vmatpush1.msra.mxu0 0.0
        %1758 = vmatprep.subr.mxu0 0.0
        %1759 = vmatpush1.msra.mxu0 0.0
        %1760 = vmatprep.subr.mxu0 0.0
        %1761 = vmatpush1.msra.mxu0 0.0
        %1762 = vmatprep.subr.mxu0 0.0
        %1763 = vmatpush1.msra.mxu0 0.0
        %1764 = vmatprep.mubr.f32.mxu0 0.0
        %1765 = vmatmul.mubr.f32.gmra.mrb[0].mxu0 %v1653
        %v1766 = vpop.f32.mrb[0].mxu0
        %v1767 = vadd.f32 0.0, %v1766
        %v1768 = vpop.f32.mrb[0].mxu0
        %1769 = vmatprep.mubr.f32.mxu0 0.0
        %1770 = vmatmul.mubr.f32.gmra.mrb[0].mxu0 %v1656
        %v1771 = vpop.f32.mrb[0].mxu0
        %v1772 = vadd.f32 0.0, %v1771
        %v1773 = vpop.f32.mrb[0].mxu0
        %1774 = vmatprep.mubr.f32.mxu0 0.0
        %1775 = vmatmul.mubr.f32.gmra.mrb[0].mxu0 %v1659
        %v1776 = vpop.f32.mrb[0].mxu0
        %v1777 = vadd.f32 0.0, %v1776
        %v1778 = vpop.f32.mrb[0].mxu0
        %1779 = vmatprep.mubr.f32.mxu0 0.0
        %1780 = vmatmul.mubr.f32.gmra.mrb[0].mxu0 %v1662
        %v1781 = vpop.f32.mrb[0].mxu0
        %v1782 = vadd.f32 0.0, %v1781
        %v1783 = vpop.f32.mrb[0].mxu0
        %1784 = vmatprep.mubr.f32.mxu0 0.0
        %1785 = vmatmul.mubr.f32.gmra.mrb[0].mxu0 %v1665
        %v1786 = vpop.f32.mrb[0].mxu0
        %v1787 = vadd.f32 0.0, %v1786
        %v1788 = vpop.f32.mrb[0].mxu0
        %1789 = vmatprep.mubr.f32.mxu0 0.0
        %1790 = vmatmul.mubr.f32.gmra.mrb[0].mxu0 %v1668
        %v1791 = vpop.f32.mrb[0].mxu0
        %v1792 = vadd.f32 0.0, %v1791
        %v1793 = vpop.f32.mrb[0].mxu0
        %1794 = vmatprep.mubr.f32.mxu0 0.0
        %1795 = vmatmul.mubr.f32.gmra.mrb[0].mxu0 %v1671
        %v1796 = vpop.f32.mrb[0].mxu0
        %v1797 = vadd.f32 0.0, %v1796
        %v1798 = vpop.f32.mrb[0].mxu0
        %1799 = vmatprep.mubr.f32.mxu0 0.0
        %1800 = vmatmul.mubr.f32.gmra.mrb[0].mxu0 %v1674
        %v1801 = vpop.f32.mrb[0].mxu0
        %v1802 = vadd.f32 0.0, %v1801
        %v1803 = vpop.f32.mrb[0].mxu0
        %1804 = vmatprep.mubr.f32.mxu0 0.0
        %1805 = vmatmul.mubr.f32.gmra.mrb[0].mxu0 %v1677
        %v1806 = vpop.f32.mrb[0].mxu0
        %v1807 = vadd.f32 0.0, %v1806
        %v1808 = vpop.f32.mrb[0].mxu0
        %1809 = vmatprep.mubr.f32.mxu0 0.0
        %1810 = vmatmul.mubr.f32.gmra.mrb[0].mxu0 %v1680
        %v1811 = vpop.f32.mrb[0].mxu0
        %v1812 = vadd.f32 0.0, %v1811
        %v1813 = vpop.f32.mrb[0].mxu0
        %1814 = vmatprep.mubr.f32.mxu0 0.0
        %1815 = vmatmul.mubr.f32.gmra.mrb[0].mxu0 %v1683
        %v1816 = vpop.f32.mrb[0].mxu0
        %v1817 = vadd.f32 0.0, %v1816
        %v1818 = vpop.f32.mrb[0].mxu0
        %1819 = vmatprep.mubr.f32.mxu0 0.0
        %1820 = vmatmul.mubr.f32.gmra.mrb[0].mxu0 %v1686
        %v1821 = vpop.f32.mrb[0].mxu0
        %v1822 = vadd.f32 0.0, %v1821
        %v1823 = vpop.f32.mrb[0].mxu0
        %1824 = vmatprep.mubr.f32.mxu0 0.0
        %1825 = vmatmul.mubr.f32.gmra.mrb[0].mxu0 %v1689
        %v1826 = vpop.f32.mrb[0].mxu0
        %v1827 = vadd.f32 0.0, %v1826
        %v1828 = vpop.f32.mrb[0].mxu0
        %1829 = vmatprep.mubr.f32.mxu0 0.0
        %1830 = vmatmul.mubr.f32.gmra.mrb[0].mxu0 %v1692
        %v1831 = vpop.f32.mrb[0].mxu0
        %v1832 = vadd.f32 0.0, %v1831
        %v1833 = vpop.f32.mrb[0].mxu0
        %1834 = vmatprep.mubr.f32.mxu0 0.0
        %1835 = vmatmul.mubr.f32.gmra.mrb[0].mxu0 %v1695
        %v1836 = vpop.f32.mrb[0].mxu0
        %v1837 = vadd.f32 0.0, %v1836
        %v1838 = vpop.f32.mrb[0].mxu0
        %1839 = vmatprep.mubr.f32.mxu0 0.0
        %1840 = vmatmul.mubr.f32.gmra.mrb[0].mxu0 %v1698
        %v1841 = vpop.f32.mrb[0].mxu0
        %v1842 = vadd.f32 0.0, %v1841
        %v1843 = vpop.f32.mrb[0].mxu0
        %1844 = vdwg.mxu0
        %s1845 = scalar_lea.vmem %s181, 128
        %1846 = vst.msk [vmem:[%s1845] sm:$0xff] %vm993, %v1767
        %1847 = vst.msk [vmem:[%s1845 + $0x8] sm:$0xff] %vm993, %v1772
        %1848 = vst.msk [vmem:[%s1845 + $0x10] sm:$0xff] %vm993, %v1777
        %1849 = vst.msk [vmem:[%s1845 + $0x18] sm:$0xff] %vm993, %v1782
        %1850 = vst.msk [vmem:[%s1845 + $0x20] sm:$0xff] %vm993, %v1787
        %1851 = vst.msk [vmem:[%s1845 + $0x28] sm:$0xff] %vm993, %v1792
        %1852 = vst.msk [vmem:[%s1845 + $0x30] sm:$0xff] %vm993, %v1797
        %1853 = vst.msk [vmem:[%s1845 + $0x38] sm:$0xff] %vm993, %v1802
        %1854 = vst.msk [vmem:[%s1845 + $0x40] sm:$0xff] %vm993, %v1807
        %1855 = vst.msk [vmem:[%s1845 + $0x48] sm:$0xff] %vm993, %v1812
        %1856 = vst.msk [vmem:[%s1845 + $0x50] sm:$0xff] %vm993, %v1817
        %1857 = vst.msk [vmem:[%s1845 + $0x58] sm:$0xff] %vm993, %v1822
        %1858 = vst.msk [vmem:[%s1845 + $0x60] sm:$0xff] %vm993, %v1827
        %1859 = vst.msk [vmem:[%s1845 + $0x68] sm:$0xff] %vm993, %v1832
        %1860 = vst.msk [vmem:[%s1845 + $0x70] sm:$0xff] %vm993, %v1837
        %1861 = vst.msk [vmem:[%s1845 + $0x78] sm:$0xff] %vm993, %v1842
        %v1862 = vsel %vm993, %v1767, 0.0
        %v1863 = vsel %vm993, %v1772, 0.0
        %v1864 = vadd.f32 %v1862, %v1863
        %v1865 = vsel %vm993, %v1777, 0.0
        %v1866 = vadd.f32 %v1864, %v1865
        %v1867 = vsel %vm993, %v1782, 0.0
        %v1868 = vadd.f32 %v1866, %v1867
        %v1869 = vsel %vm993, %v1787, 0.0
        %v1870 = vadd.f32 %v1868, %v1869
        %v1871 = vsel %vm993, %v1792, 0.0
        %v1872 = vadd.f32 %v1870, %v1871
        %v1873 = vsel %vm993, %v1797, 0.0
        %v1874 = vadd.f32 %v1872, %v1873
        %v1875 = vsel %vm993, %v1802, 0.0
        %v1876 = vadd.f32 %v1874, %v1875
        %v1877 = vsel %vm993, %v1807, 0.0
        %v1878 = vadd.f32 %v1876, %v1877
        %v1879 = vsel %vm993, %v1812, 0.0
        %v1880 = vadd.f32 %v1878, %v1879
        %v1881 = vsel %vm993, %v1817, 0.0
        %v1882 = vadd.f32 %v1880, %v1881
        %v1883 = vsel %vm993, %v1822, 0.0
        %v1884 = vadd.f32 %v1882, %v1883
        %v1885 = vsel %vm993, %v1827, 0.0
        %v1886 = vadd.f32 %v1884, %v1885
        %v1887 = vsel %vm993, %v1832, 0.0
        %v1888 = vadd.f32 %v1886, %v1887
        %v1889 = vsel %vm993, %v1837, 0.0
        %v1890 = vadd.f32 %v1888, %v1889
        %v1891 = vsel %vm993, %v1842, 0.0
        %v1892 = vadd.f32 %v1890, %v1891
        %v1893 = vrot.slane %v1892, 4
        %v1894 = vadd.f32 %v1892, %v1893
        %v1895 = vrot.slane %v1894, 2
        %v1896 = vadd.f32 %v1894, %v1895
        %v1897 = vrot.slane %v1896, 1
        %v1898 = vadd.f32 %v1896, %v1897
        %v1899 = vadd.f32 %v1047, %v1898
        %v1900 = vmul.f32 %v1767, %v1767
        %v1901 = vmul.f32 %v1772, %v1772
        %v1902 = vmul.f32 %v1777, %v1777
        %v1903 = vmul.f32 %v1782, %v1782
        %v1904 = vmul.f32 %v1787, %v1787
        %v1905 = vmul.f32 %v1792, %v1792
        %v1906 = vmul.f32 %v1797, %v1797
        %v1907 = vmul.f32 %v1802, %v1802
        %v1908 = vmul.f32 %v1807, %v1807
        %v1909 = vmul.f32 %v1812, %v1812
        %v1910 = vmul.f32 %v1817, %v1817
        %v1911 = vmul.f32 %v1822, %v1822
        %v1912 = vmul.f32 %v1827, %v1827
        %v1913 = vmul.f32 %v1832, %v1832
        %v1914 = vmul.f32 %v1837, %v1837
        %v1915 = vmul.f32 %v1842, %v1842
        %v1916 = vsel %vm993, %v1900, 0.0
        %v1917 = vsel %vm993, %v1901, 0.0
        %v1918 = vadd.f32 %v1916, %v1917
        %v1919 = vsel %vm993, %v1902, 0.0
        %v1920 = vadd.f32 %v1918, %v1919
        %v1921 = vsel %vm993, %v1903, 0.0
        %v1922 = vadd.f32 %v1920, %v1921
        %v1923 = vsel %vm993, %v1904, 0.0
        %v1924 = vadd.f32 %v1922, %v1923
        %v1925 = vsel %vm993, %v1905, 0.0
        %v1926 = vadd.f32 %v1924, %v1925
        %v1927 = vsel %vm993, %v1906, 0.0
        %v1928 = vadd.f32 %v1926, %v1927
        %v1929 = vsel %vm993, %v1907, 0.0
        %v1930 = vadd.f32 %v1928, %v1929
        %v1931 = vsel %vm993, %v1908, 0.0
        %v1932 = vadd.f32 %v1930, %v1931
        %v1933 = vsel %vm993, %v1909, 0.0
        %v1934 = vadd.f32 %v1932, %v1933
        %v1935 = vsel %vm993, %v1910, 0.0
        %v1936 = vadd.f32 %v1934, %v1935
        %v1937 = vsel %vm993, %v1911, 0.0
        %v1938 = vadd.f32 %v1936, %v1937
        %v1939 = vsel %vm993, %v1912, 0.0
        %v1940 = vadd.f32 %v1938, %v1939
        %v1941 = vsel %vm993, %v1913, 0.0
        %v1942 = vadd.f32 %v1940, %v1941
        %v1943 = vsel %vm993, %v1914, 0.0
        %v1944 = vadd.f32 %v1942, %v1943
        %v1945 = vsel %vm993, %v1915, 0.0
        %v1946 = vadd.f32 %v1944, %v1945
        %v1947 = vrot.slane %v1946, 4
        %v1948 = vadd.f32 %v1946, %v1947
        %v1949 = vrot.slane %v1948, 2
        %v1950 = vadd.f32 %v1948, %v1949
        %v1951 = vrot.slane %v1950, 1
        %v1952 = vadd.f32 %v1950, %v1951
        %v1953 = vadd.f32 %v1101, %v1952
        %vm1954 = vcmask 57344
        %1955 = vst.msk [vmem:[%s171] sm:$0x1] %vm1954, %v1899
        %1956 = vst.msk [vmem:[%s171 + $0x1] sm:$0x1] %vm1954, %v1953
        %p1957 = scmp.lt.s32.totalorder %s18, 1
        %s1958 = scalar_select %p1957, %s18, 1
        %s1959 = smul.addr %s1958, 32
        %s1960 = smul.addr %s1959, 8
        %s1961 = scalar_lea.vmem %s2, %s1960
        %s1962 = sand.u32 %s99, 1
        %s1963 = scalar_lea.sflag [#allocation4], %s1962
        %s1964 = sand.u32 %s99, 1
        %s1965 = smul.addr %s1964, 2
        %s1966 = scalar_lea.vmem [#allocation3], %s1965
        // Predicated region
        $region29: #{tpu_custom_call.1} parent=27 // pred_check
          %p1967 = pneg %p83
        $region30: #{tpu_custom_call.1} parent=27 // pred_check_branch
          %1969 = sbr.rel (%p1967) target = $region32
        $region31: #{tpu_custom_call.1} parent=27 // pred_region
          _
        $region32: #{tpu_custom_call.1} parent=27 // pred_fallthru
          _
        // Predicated region
        $region33: #{tpu_custom_call.1} parent=27 // pred_check
          %p1970 = pneg %p109
        $region34: #{tpu_custom_call.1} parent=27 // pred_check_branch
          %1972 = sbr.rel (%p1970) target = $region36
        $region35: #{tpu_custom_call.1} parent=27 // pred_region
          %s1974 = ssub.s32 32, 32
          %1975 = vsyncadd %s1963, %s1974
          %s1976 = smul.addr %s18, 32
          %s1977 = scalar_lea.hbm %s3, %s1976
          %s1979 = sshll.u32 %s1966, 4
          %s1980 = int_to_ptr.vmem [resolvable:$true] %s1979
          %1982 = dma.vmem_to_hbm [thread:$0]  %s1980, 32, %s1977, %s1963
        $region36: #{tpu_custom_call.1} parent=27 // pred_fallthru
          _
      $region28: #{tpu_custom_call.1} parent=5 // pred_fallthru
        _
      %p1983 = scmp.le.s32.totalorder 2, %s13
      // Predicated region
      $region37: #{tpu_custom_call.1} parent=5 // pred_check
        %p1984 = pneg %p1983
      $region38: #{tpu_custom_call.1} parent=5 // pred_check_branch
        %1986 = sbr.rel (%p1984) target = $region40
      $region39: #{tpu_custom_call.1} parent=5 // pred_region
        %s1987 = ssub.s32 %s13, 2
        // Predicated region
        $region41: #{tpu_custom_call.1} parent=39 // pred_check
          %p1988 = pneg %p89
        $region42: #{tpu_custom_call.1} parent=39 // pred_check_branch
          %1990 = sbr.rel (%p1988) target = $region44
        $region43: #{tpu_custom_call.1} parent=39 // pred_region
          %p1991 = scmp.lt.s32.totalorder %s19, 1
          %s1992 = scalar_select %p1991, %s19, 1
          %s1993 = smul.addr %s1992, 32
          %s1994 = smul.addr %s1993, 8
          %s1995 = scalar_lea.vmem %s2, %s1994
        $region44: #{tpu_custom_call.1} parent=39 // pred_fallthru
          _
        // Predicated region
        $region45: #{tpu_custom_call.1} parent=39 // pred_check
          %p1996 = pneg %p115
        $region46: #{tpu_custom_call.1} parent=39 // pred_check_branch
          %1998 = sbr.rel (%p1996) target = $region48
        $region47: #{tpu_custom_call.1} parent=39 // pred_region
          %s1999 = sand.u32 %s100, 1
          %s2000 = scalar_lea.sflag [#allocation4], %s1999
          %s2001 = sand.u32 %s100, 1
          %s2002 = smul.addr %s2001, 2
          %s2003 = scalar_lea.vmem [#allocation3], %s2002
          %2004 = dma.done %s2000, 32
        $region48: #{tpu_custom_call.1} parent=39 // pred_fallthru
          _
      $region40: #{tpu_custom_call.1} parent=5 // pred_fallthru
        _
    $region6: #{tpu_custom_call.1} parent=1 // loop_footer
      %s17 = sadd.s32 1, %s13
    $region7: #{tpu_custom_call.1} parent=1 // loop_footer_branch
      %12 = sbr.rel target = $region3
    $region8: #{tpu_custom_call.1} parent=1 // loop_exit
      _
    %2005 = vsyncpa [#allocation4], 1
    %s2006 = scalar_lea.sflag [#allocation4], 1
    %2007 = vsyncpa %s2006, 1

</llo_original>
